<compile_context>
chip_gen: v7x
topology: tpu7x:2x2x1
jax: 0.10.0
libtpu: 0.0.40
codegen_flags: <defaults>
</compile_context>

<pallas_src>
import functools
import math

import jax
import jax.numpy as jnp
from jax import lax
from jax.experimental import pallas as pl
from jax.experimental.pallas import tpu as pltpu


def _mha_kernel(xq_ref, xkv_ref, wq_ref, wkv_ref, wp_ref, bp_ref, o_ref,
                q_scr, kv_scr, cat_scr, *, n_head, head_size, q_tile, seq_len):
    # xq_ref:  (1, TQ, C)     bf16  query rows of this tile
    # xkv_ref: (1, T,  C)     bf16  full sequence (source of K/V)
    # wq_ref:  (C, H*D)       bf16  Q projection, 1/sqrt(C) folded into columns
    # wkv_ref: (C, 2*H*D)     bf16  fused K|V projection (head-major columns)
    # wp_ref:  (H*D, C_pad)   bf16  output projection (zero-padded if needed)
    # bp_ref:  (1, C_pad)     f32   output bias
    # o_ref:   (1, TQ, C_pad) f32   output block
    # q_scr/kv_scr/cat_scr:   bf16  VMEM scratch
    H, D = n_head, head_size
    HD = H * D
    qt = pl.program_id(1)

    # QKV projections: bf16 MXU operands, f32 accumulation, bf16 VMEM scratch.
    # Materializing into scratch keeps live ranges to one head tile instead of
    # spilling a (TQ, 3HD) SSA value across the unrolled head loop.
    q_scr[...] = jnp.dot(xq_ref[0], wq_ref[...],
                         preferred_element_type=jnp.float32).astype(jnp.bfloat16)
    kv_scr[...] = jnp.dot(xkv_ref[0], wkv_ref[...],
                          preferred_element_type=jnp.float32).astype(jnp.bfloat16)

    # Causal mask for this query tile (global row index = qt*TQ + local row).
    row = qt * q_tile + lax.broadcasted_iota(jnp.int32, (q_tile, seq_len), 0)
    col = lax.broadcasted_iota(jnp.int32, (q_tile, seq_len), 1)
    causal = col <= row
    neg_big = jnp.float32(-1e30)   # finite; robust even for fully-masked rows

    # Per-head attention.  H is small and static -> unrolled Python loop.
    # NOTE(perf): slices are D lanes wide; for production D (64/128) process
    # heads in 128-lane groups so these loads/stores are lane-aligned.
    for h in range(H):
        qh = q_scr[:, h * D:(h + 1) * D]                 # (TQ, D) bf16, pre-scaled
        kh = kv_scr[:, h * D:(h + 1) * D]                # (T,  D) bf16
        vh = kv_scr[:, HD + h * D: HD + (h + 1) * D]     # (T,  D) bf16

        # scores = (q / sqrt(C)) @ k^T  (scale already folded into wq)
        s = lax.dot_general(qh, kh, (((1,), (1,)), ((), ())),
                            preferred_element_type=jnp.float32)   # (TQ, T) f32
        s = jnp.where(causal, s, neg_big)

        # Softmax kept in f32 (bf16 elementwise is emulated on v5e).  Exact
        # reciprocal: approx=True was the main source of the 1e-3 mismatch.
        s = s - jnp.max(s, axis=-1, keepdims=True)
        p = jnp.exp(s)
        p = p * pl.reciprocal(jnp.sum(p, axis=-1, keepdims=True), approx=False)

        cat_scr[:, h * D:(h + 1) * D] = jnp.dot(
            p.astype(jnp.bfloat16), vh,
            preferred_element_type=jnp.float32).astype(jnp.bfloat16)

    # concat-over-heads + output projection as one bf16 matmul, bias fused.
    out = jnp.dot(cat_scr[...], wp_ref[...], preferred_element_type=jnp.float32)
    o_ref[0] = (out + bp_ref[...]).astype(o_ref.dtype)


def multi_head_attention(x, wq, wk, wv, wp, bp, *, q_tile=None):
    """x: (B, T, C) f32; wq/wk/wv: (H, C, D); wp: (H, D, C); bp: (C,) -> (B, T, C) f32."""
    B, T, C = x.shape
    H, _, D = wq.shape
    HD = H * D

    # Query-tile size: full T for short sequences, 256 rows otherwise.
    if q_tile is None:
        q_tile = 256 if (T > 256 and T % 256 == 0) else T
    assert T % q_tile == 0
    nq = T // q_tile

    # Lane-dense output only when C is not already a multiple of 128.
    pad = (-C) % 128
    C_pad = C + pad

    inv_scale = 1.0 / math.sqrt(C)   # reference module scales by n_embd**0.5

    # Head-major fused weights; 1/sqrt(C) folded into the Q columns.
    wq2 = jnp.transpose(wq, (1, 0, 2)).reshape(C, HD) * inv_scale      # (C, HD)
    wk2 = jnp.transpose(wk, (1, 0, 2)).reshape(C, HD)
    wv2 = jnp.transpose(wv, (1, 0, 2)).reshape(C, HD)
    wkv = jnp.concatenate([wk2, wv2], axis=1)                          # (C, 2*HD)

    wp2 = wp.reshape(HD, C)
    wp_pad = jnp.pad(wp2, ((0, 0), (0, pad))) if pad else wp2          # (HD, C_pad)
    bp_pad = (jnp.pad(bp, (0, pad)) if pad else bp).reshape(1, C_pad)  # (1, C_pad)

    # bf16 MXU operands (f32 accumulation inside the kernel).
    x_bf = x.astype(jnp.bfloat16)
    wq_bf = wq2.astype(jnp.bfloat16)
    wkv_bf = wkv.astype(jnp.bfloat16)
    wp_bf = wp_pad.astype(jnp.bfloat16)
    bp_f32 = bp_pad.astype(jnp.float32)

    kernel = functools.partial(_mha_kernel, n_head=H, head_size=D,
                               q_tile=q_tile, seq_len=T)

    flops = (2 * B * T * C * HD            # Q projection
             + 2 * B * nq * T * C * 2 * HD  # K/V projection (per q-tile)
             + 4 * B * H * T * T * D        # q@k^T and p@v
             + 2 * B * T * HD * C_pad)      # output projection
    transcendentals = B * H * T * T
    bytes_accessed = (2 * B * T * C
                      + 2 * B * nq * T * C
                      + B * nq * (2 * C * HD + 4 * C * HD + 2 * HD * C_pad + 4 * C_pad)
                      + 4 * B * T * C_pad)

    # NOTE(perf): wq/wkv/wp/bias have constant index_maps; at production C they
    # should be single-buffered (pipeline_mode=pl.Buffered(1)) or staged once
    # manually to reclaim VMEM.  Negligible at these shapes, so omitted.
    out = pl.pallas_call(
        kernel,
        out_shape=jax.ShapeDtypeStruct((B, T, C_pad), jnp.float32),
        grid=(B, nq),
        in_specs=[
            pl.BlockSpec((1, q_tile, C), lambda b, qt: (b, qt, 0)),   # x (q rows)
            pl.BlockSpec((1, T, C), lambda b, qt: (b, 0, 0)),         # x (k/v rows)
            pl.BlockSpec((C, HD), lambda b, qt: (0, 0)),              # Wq (scaled)
            pl.BlockSpec((C, 2 * HD), lambda b, qt: (0, 0)),          # fused Wkv
            pl.BlockSpec((HD, C_pad), lambda b, qt: (0, 0)),          # Wproj
            pl.BlockSpec((1, C_pad), lambda b, qt: (0, 0)),           # bias
        ],
        out_specs=pl.BlockSpec((1, q_tile, C_pad), lambda b, qt: (b, qt, 0)),
        scratch_shapes=[
            pltpu.VMEM((q_tile, HD), jnp.bfloat16),       # q
            pltpu.VMEM((T, 2 * HD), jnp.bfloat16),        # k|v
            pltpu.VMEM((q_tile, HD), jnp.bfloat16),       # concat-over-heads
        ],
        compiler_params=pltpu.CompilerParams(
            dimension_semantics=("parallel", "parallel"),
            vmem_limit_bytes=64 * 1024 * 1024,
        ),
        cost_estimate=pl.CostEstimate(flops=flops,
                                      transcendentals=transcendentals,
                                      bytes_accessed=bytes_accessed),
    )(x_bf, x_bf, wq_bf, wkv_bf, wp_bf, bp_f32)

    return out[:, :, :C] if pad else out


def _reference(x, wq, wk, wv, wp, bp):
    """Pure-JAX reference matching the PyTorch forward (eval mode)."""
    B, T, C = x.shape
    H, _, D = wq.shape
    heads = []
    for h in range(H):
        q = x @ wq[h]
        k = x @ wk[h]
        v = x @ wv[h]
        s = (q @ jnp.swapaxes(k, -2, -1)) / (C ** 0.5)
        mask = jnp.tril(jnp.ones((T, T), dtype=bool))
        s = jnp.where(mask, s, -jnp.inf)
        p = jax.nn.softmax(s, axis=-1)
        heads.append(p @ v)
    cat = jnp.concatenate(heads, axis=-1)          # (B, T, H*D)
    wp_full = wp.reshape(H * D, C)
    return cat @ wp_full + bp


if __name__ == "__main__":
    # Small shapes consistent with the module.
    B, T = 2, 8
    n_embd, n_head, head_size, block_size = 32, 4, 8, 8
    assert T <= block_size

    key = jax.random.PRNGKey(0)
    kx, kq, kk, kv, kp, kb = jax.random.split(key, 6)

    x = jax.random.normal(kx, (B, T, n_embd), dtype=jnp.float32)
    wq = jax.random.normal(kq, (n_head, n_embd, head_size), jnp.float32) / math.sqrt(n_embd)
    wk = jax.random.normal(kk, (n_head, n_embd, head_size), jnp.float32) / math.sqrt(n_embd)
    wv = jax.random.normal(kv, (n_head, n_embd, head_size), jnp.float32) / math.sqrt(n_embd)
    wp = jax.random.normal(kp, (n_head, head_size, n_embd), jnp.float32) / math.sqrt(n_head * head_size)
    bp = jax.random.normal(kb, (n_embd,), jnp.float32) * 0.01

    out = multi_head_attention(x, wq, wk, wv, wp, bp)
    out = jax.block_until_ready(out)

    with jax.default_matmul_precision("highest"):
        ref = _reference(x, wq, wk, wv, wp, bp)

    assert out.shape == (B, T, n_embd)
    # Kernel feeds the MXU bf16 operands (f32 accumulation): relative error is
    # bounded by bf16 epsilon (~4e-3) propagated through three matmul stages,
    # so compare against the f32 reference with a matching tolerance.
    assert jnp.allclose(out, ref, atol=5e-2, rtol=5e-2), "mismatch vs JAX reference"

    print("KERNEL_OK")
</pallas_src>

<mosaic_0001>
module attributes {stable_mosaic.version = 11 : i64} {
  func.func @_mha_kernel(%arg0: i32, %arg1: i32, %arg2: memref<1x8x32xbf16, #tpu.memory_space<vmem>>, %arg3: memref<1x8x32xbf16, #tpu.memory_space<vmem>>, %arg4: memref<32x32xbf16, #tpu.memory_space<vmem>>, %arg5: memref<32x64xbf16, #tpu.memory_space<vmem>>, %arg6: memref<32x128xbf16, #tpu.memory_space<vmem>>, %arg7: memref<1x128xf32, #tpu.memory_space<vmem>>, %arg8: memref<1x8x128xf32, #tpu.memory_space<vmem>>, %arg9: memref<8x32xbf16, #tpu.memory_space<vmem>>, %arg10: memref<8x64xbf16, #tpu.memory_space<vmem>>, %arg11: memref<8x32xbf16, #tpu.memory_space<vmem>>) attributes {dimension_semantics = [#tpu.dimension_semantics<parallel>, #tpu.dimension_semantics<parallel>], iteration_bounds = array<i64: 2, 1>, scalar_prefetch = 0 : i64, scratch_operands = 3 : i64, tpu.core_type = #tpu.core_type<tc>, window_params = [{transform_indices = @transform_0, window_bounds = array<i64: 1, 8, 32>}, {transform_indices = @transform_1, window_bounds = array<i64: 1, 8, 32>}, {pipeline_mode = #tpu.pipeline_mode<synchronous>, transform_indices = @transform_2, window_bounds = array<i64: 32, 32>}, {pipeline_mode = #tpu.pipeline_mode<synchronous>, transform_indices = @transform_3, window_bounds = array<i64: 32, 64>}, {pipeline_mode = #tpu.pipeline_mode<synchronous>, transform_indices = @transform_4, window_bounds = array<i64: 32, 128>}, {pipeline_mode = #tpu.pipeline_mode<synchronous>, transform_indices = @transform_5, window_bounds = array<i64: 1, 128>}, {transform_indices = @transform_6, window_bounds = array<i64: 1, 8, 128>}]} {
    %c0 = arith.constant 0 : index
    %c0_0 = arith.constant 0 : index
    %c0_1 = arith.constant 0 : index
    %0 = vector.load %arg2[%c0, %c0_0, %c0_1] : memref<1x8x32xbf16, #tpu.memory_space<vmem>>, vector<1x8x32xbf16>
    %1 = vector.shape_cast %0 : vector<1x8x32xbf16> to vector<8x32xbf16>
    %c0_2 = arith.constant 0 : index
    %c0_3 = arith.constant 0 : index
    %2 = vector.load %arg4[%c0_2, %c0_3] : memref<32x32xbf16, #tpu.memory_space<vmem>>, vector<32x32xbf16>
    %cst = arith.constant dense<0.000000e+00> : vector<8x32xf32>
    %3 = tpu.matmul %1, %2, %cst {dimension_numbers = #tpu.dot_dimension_numbers<[1], [0], [0], [1], [0, 0, 1, 1], [], []>} : vector<8x32xbf16>, vector<32x32xbf16>, vector<8x32xf32> -> vector<8x32xf32>
    %4 = arith.truncf %3 : vector<8x32xf32> to vector<8x32xbf16>
    %c0_4 = arith.constant 0 : index
    %c0_5 = arith.constant 0 : index
    %5 = vector.load %arg9[%c0_4, %c0_5] : memref<8x32xbf16, #tpu.memory_space<vmem>>, vector<8x32xbf16>
    tpu.vector_store %arg9[%c0_4, %c0_5], %4 {strides = array<i32>} : memref<8x32xbf16, #tpu.memory_space<vmem>>, vector<8x32xbf16>,
    %c0_6 = arith.constant 0 : index
    %c0_7 = arith.constant 0 : index
    %c0_8 = arith.constant 0 : index
    %6 = vector.load %arg3[%c0_6, %c0_7, %c0_8] : memref<1x8x32xbf16, #tpu.memory_space<vmem>>, vector<1x8x32xbf16>
    %7 = vector.shape_cast %6 : vector<1x8x32xbf16> to vector<8x32xbf16>
    %c0_9 = arith.constant 0 : index
    %c0_10 = arith.constant 0 : index
    %8 = vector.load %arg5[%c0_9, %c0_10] : memref<32x64xbf16, #tpu.memory_space<vmem>>, vector<32x64xbf16>
    %cst_11 = arith.constant dense<0.000000e+00> : vector<8x64xf32>
    %9 = tpu.matmul %7, %8, %cst_11 {dimension_numbers = #tpu.dot_dimension_numbers<[1], [0], [0], [1], [0, 0, 1, 1], [], []>} : vector<8x32xbf16>, vector<32x64xbf16>, vector<8x64xf32> -> vector<8x64xf32>
    %10 = arith.truncf %9 : vector<8x64xf32> to vector<8x64xbf16>
    %c0_12 = arith.constant 0 : index
    %c0_13 = arith.constant 0 : index
    %11 = vector.load %arg10[%c0_12, %c0_13] : memref<8x64xbf16, #tpu.memory_space<vmem>>, vector<8x64xbf16>
    tpu.vector_store %arg10[%c0_12, %c0_13], %10 {strides = array<i32>} : memref<8x64xbf16, #tpu.memory_space<vmem>>, vector<8x64xbf16>,
    %c8_i32 = arith.constant 8 : i32
    %12 = arith.muli %arg1, %c8_i32 : i32
    %13 = tpu.iota {dimensions = array<i32: 0>} : vector<8x8xi32>
    %14 = vector.broadcast %12 : i32 to vector<8x8xi32>
    %15 = arith.addi %14, %13 : vector<8x8xi32>
    %16 = tpu.iota {dimensions = array<i32: 1>} : vector<8x8xi32>
    %17 = arith.cmpi sle, %16, %15 : vector<8x8xi32>
    %c0_14 = arith.constant 0 : index
    %c0_15 = arith.constant 0 : index
    %18 = vector.load %arg9[%c0_14, %c0_15] : memref<8x32xbf16, #tpu.memory_space<vmem>>, vector<8x8xbf16>
    %c0_16 = arith.constant 0 : index
    %c0_17 = arith.constant 0 : index
    %19 = vector.load %arg10[%c0_16, %c0_17] : memref<8x64xbf16, #tpu.memory_space<vmem>>, vector<8x8xbf16>
    %c0_18 = arith.constant 0 : index
    %c32 = arith.constant 32 : index
    %20 = vector.load %arg10[%c0_18, %c32] : memref<8x64xbf16, #tpu.memory_space<vmem>>, vector<8x8xbf16>
    %cst_19 = arith.constant dense<0.000000e+00> : vector<8x8xf32>
    %21 = tpu.matmul %18, %19, %cst_19 {dimension_numbers = #tpu.dot_dimension_numbers<[1], [1], [0], [0], [0, 0, 1, 0], [], []>} : vector<8x8xbf16>, vector<8x8xbf16>, vector<8x8xf32> -> vector<8x8xf32>
    %cst_20 = arith.constant -1.000000e+30 : f32
    %22 = vector.broadcast %cst_20 : f32 to vector<8x8xf32>
    %23 = arith.select %17, %21, %22 : vector<8x8xi1>, vector<8x8xf32>
    %cst_21 = arith.constant dense<0xFF800000> : vector<8xf32>
    %24 = vector.multi_reduction <maximumf>, %23, %cst_21 [1] : vector<8x8xf32> to vector<8xf32>
    %25 = vector.shape_cast %24 : vector<8xf32> to vector<8x1xf32>
    %26 = vector.broadcast %25 : vector<8x1xf32> to vector<8x8xf32>
    %27 = arith.subf %23, %26 : vector<8x8xf32>
    %28 = math.exp %27 : vector<8x8xf32>
    %cst_22 = arith.constant dense<0.000000e+00> : vector<8xf32>
    %29 = vector.multi_reduction <add>, %28, %cst_22 [1] : vector<8x8xf32> to vector<8xf32>
    %30 = vector.shape_cast %29 : vector<8xf32> to vector<8x1xf32>
    %31 = tpu.reciprocal %30 : vector<8x1xf32> -> vector<8x1xf32>
    %32 = vector.broadcast %31 : vector<8x1xf32> to vector<8x8xf32>
    %33 = arith.mulf %28, %32 : vector<8x8xf32>
    %34 = arith.truncf %33 : vector<8x8xf32> to vector<8x8xbf16>
    %cst_23 = arith.constant dense<0.000000e+00> : vector<8x8xf32>
    %35 = tpu.matmul %34, %20, %cst_23 {dimension_numbers = #tpu.dot_dimension_numbers<[1], [0], [0], [1], [0, 0, 1, 1], [], []>} : vector<8x8xbf16>, vector<8x8xbf16>, vector<8x8xf32> -> vector<8x8xf32>
    %36 = arith.truncf %35 : vector<8x8xf32> to vector<8x8xbf16>
    %c0_24 = arith.constant 0 : index
    %c0_25 = arith.constant 0 : index
    %37 = vector.load %arg11[%c0_24, %c0_25] : memref<8x32xbf16, #tpu.memory_space<vmem>>, vector<8x8xbf16>
    tpu.vector_store %arg11[%c0_24, %c0_25], %36 {strides = array<i32>} : memref<8x32xbf16, #tpu.memory_space<vmem>>, vector<8x8xbf16>,
    %c0_26 = arith.constant 0 : index
    %c8 = arith.constant 8 : index
    %38 = vector.load %arg9[%c0_26, %c8] : memref<8x32xbf16, #tpu.memory_space<vmem>>, vector<8x8xbf16>
    %c0_27 = arith.constant 0 : index
    %c8_28 = arith.constant 8 : index
    %39 = vector.load %arg10[%c0_27, %c8_28] : memref<8x64xbf16, #tpu.memory_space<vmem>>, vector<8x8xbf16>
    %c0_29 = arith.constant 0 : index
    %c40 = arith.constant 40 : index
    %40 = vector.load %arg10[%c0_29, %c40] : memref<8x64xbf16, #tpu.memory_space<vmem>>, vector<8x8xbf16>
    %cst_30 = arith.constant dense<0.000000e+00> : vector<8x8xf32>
    %41 = tpu.matmul %38, %39, %cst_30 {dimension_numbers = #tpu.dot_dimension_numbers<[1], [1], [0], [0], [0, 0, 1, 0], [], []>} : vector<8x8xbf16>, vector<8x8xbf16>, vector<8x8xf32> -> vector<8x8xf32>
    %cst_31 = arith.constant -1.000000e+30 : f32
    %42 = vector.broadcast %cst_31 : f32 to vector<8x8xf32>
    %43 = arith.select %17, %41, %42 : vector<8x8xi1>, vector<8x8xf32>
    %cst_32 = arith.constant dense<0xFF800000> : vector<8xf32>
    %44 = vector.multi_reduction <maximumf>, %43, %cst_32 [1] : vector<8x8xf32> to vector<8xf32>
    %45 = vector.shape_cast %44 : vector<8xf32> to vector<8x1xf32>
    %46 = vector.broadcast %45 : vector<8x1xf32> to vector<8x8xf32>
    %47 = arith.subf %43, %46 : vector<8x8xf32>
    %48 = math.exp %47 : vector<8x8xf32>
    %cst_33 = arith.constant dense<0.000000e+00> : vector<8xf32>
    %49 = vector.multi_reduction <add>, %48, %cst_33 [1] : vector<8x8xf32> to vector<8xf32>
    %50 = vector.shape_cast %49 : vector<8xf32> to vector<8x1xf32>
    %51 = tpu.reciprocal %50 : vector<8x1xf32> -> vector<8x1xf32>
    %52 = vector.broadcast %51 : vector<8x1xf32> to vector<8x8xf32>
    %53 = arith.mulf %48, %52 : vector<8x8xf32>
    %54 = arith.truncf %53 : vector<8x8xf32> to vector<8x8xbf16>
    %cst_34 = arith.constant dense<0.000000e+00> : vector<8x8xf32>
    %55 = tpu.matmul %54, %40, %cst_34 {dimension_numbers = #tpu.dot_dimension_numbers<[1], [0], [0], [1], [0, 0, 1, 1], [], []>} : vector<8x8xbf16>, vector<8x8xbf16>, vector<8x8xf32> -> vector<8x8xf32>
    %56 = arith.truncf %55 : vector<8x8xf32> to vector<8x8xbf16>
    %c0_35 = arith.constant 0 : index
    %c8_36 = arith.constant 8 : index
    %57 = vector.load %arg11[%c0_35, %c8_36] : memref<8x32xbf16, #tpu.memory_space<vmem>>, vector<8x8xbf16>
    tpu.vector_store %arg11[%c0_35, %c8_36], %56 {strides = array<i32>} : memref<8x32xbf16, #tpu.memory_space<vmem>>, vector<8x8xbf16>,
    %c0_37 = arith.constant 0 : index
    %c16 = arith.constant 16 : index
    %58 = vector.load %arg9[%c0_37, %c16] : memref<8x32xbf16, #tpu.memory_space<vmem>>, vector<8x8xbf16>
    %c0_38 = arith.constant 0 : index
    %c16_39 = arith.constant 16 : index
    %59 = vector.load %arg10[%c0_38, %c16_39] : memref<8x64xbf16, #tpu.memory_space<vmem>>, vector<8x8xbf16>
    %c0_40 = arith.constant 0 : index
    %c48 = arith.constant 48 : index
    %60 = vector.load %arg10[%c0_40, %c48] : memref<8x64xbf16, #tpu.memory_space<vmem>>, vector<8x8xbf16>
    %cst_41 = arith.constant dense<0.000000e+00> : vector<8x8xf32>
    %61 = tpu.matmul %58, %59, %cst_41 {dimension_numbers = #tpu.dot_dimension_numbers<[1], [1], [0], [0], [0, 0, 1, 0], [], []>} : vector<8x8xbf16>, vector<8x8xbf16>, vector<8x8xf32> -> vector<8x8xf32>
    %cst_42 = arith.constant -1.000000e+30 : f32
    %62 = vector.broadcast %cst_42 : f32 to vector<8x8xf32>
    %63 = arith.select %17, %61, %62 : vector<8x8xi1>, vector<8x8xf32>
    %cst_43 = arith.constant dense<0xFF800000> : vector<8xf32>
    %64 = vector.multi_reduction <maximumf>, %63, %cst_43 [1] : vector<8x8xf32> to vector<8xf32>
    %65 = vector.shape_cast %64 : vector<8xf32> to vector<8x1xf32>
    %66 = vector.broadcast %65 : vector<8x1xf32> to vector<8x8xf32>
    %67 = arith.subf %63, %66 : vector<8x8xf32>
    %68 = math.exp %67 : vector<8x8xf32>
    %cst_44 = arith.constant dense<0.000000e+00> : vector<8xf32>
    %69 = vector.multi_reduction <add>, %68, %cst_44 [1] : vector<8x8xf32> to vector<8xf32>
    %70 = vector.shape_cast %69 : vector<8xf32> to vector<8x1xf32>
    %71 = tpu.reciprocal %70 : vector<8x1xf32> -> vector<8x1xf32>
    %72 = vector.broadcast %71 : vector<8x1xf32> to vector<8x8xf32>
    %73 = arith.mulf %68, %72 : vector<8x8xf32>
    %74 = arith.truncf %73 : vector<8x8xf32> to vector<8x8xbf16>
    %cst_45 = arith.constant dense<0.000000e+00> : vector<8x8xf32>
    %75 = tpu.matmul %74, %60, %cst_45 {dimension_numbers = #tpu.dot_dimension_numbers<[1], [0], [0], [1], [0, 0, 1, 1], [], []>} : vector<8x8xbf16>, vector<8x8xbf16>, vector<8x8xf32> -> vector<8x8xf32>
    %76 = arith.truncf %75 : vector<8x8xf32> to vector<8x8xbf16>
    %c0_46 = arith.constant 0 : index
    %c16_47 = arith.constant 16 : index
    %77 = vector.load %arg11[%c0_46, %c16_47] : memref<8x32xbf16, #tpu.memory_space<vmem>>, vector<8x8xbf16>
    tpu.vector_store %arg11[%c0_46, %c16_47], %76 {strides = array<i32>} : memref<8x32xbf16, #tpu.memory_space<vmem>>, vector<8x8xbf16>,
    %c0_48 = arith.constant 0 : index
    %c24 = arith.constant 24 : index
    %78 = vector.load %arg9[%c0_48, %c24] : memref<8x32xbf16, #tpu.memory_space<vmem>>, vector<8x8xbf16>
    %c0_49 = arith.constant 0 : index
    %c24_50 = arith.constant 24 : index
    %79 = vector.load %arg10[%c0_49, %c24_50] : memref<8x64xbf16, #tpu.memory_space<vmem>>, vector<8x8xbf16>
    %c0_51 = arith.constant 0 : index
    %c56 = arith.constant 56 : index
    %80 = vector.load %arg10[%c0_51, %c56] : memref<8x64xbf16, #tpu.memory_space<vmem>>, vector<8x8xbf16>
    %cst_52 = arith.constant dense<0.000000e+00> : vector<8x8xf32>
    %81 = tpu.matmul %78, %79, %cst_52 {dimension_numbers = #tpu.dot_dimension_numbers<[1], [1], [0], [0], [0, 0, 1, 0], [], []>} : vector<8x8xbf16>, vector<8x8xbf16>, vector<8x8xf32> -> vector<8x8xf32>
    %cst_53 = arith.constant -1.000000e+30 : f32
    %82 = vector.broadcast %cst_53 : f32 to vector<8x8xf32>
    %83 = arith.select %17, %81, %82 : vector<8x8xi1>, vector<8x8xf32>
    %cst_54 = arith.constant dense<0xFF800000> : vector<8xf32>
    %84 = vector.multi_reduction <maximumf>, %83, %cst_54 [1] : vector<8x8xf32> to vector<8xf32>
    %85 = vector.shape_cast %84 : vector<8xf32> to vector<8x1xf32>
    %86 = vector.broadcast %85 : vector<8x1xf32> to vector<8x8xf32>
    %87 = arith.subf %83, %86 : vector<8x8xf32>
    %88 = math.exp %87 : vector<8x8xf32>
    %cst_55 = arith.constant dense<0.000000e+00> : vector<8xf32>
    %89 = vector.multi_reduction <add>, %88, %cst_55 [1] : vector<8x8xf32> to vector<8xf32>
    %90 = vector.shape_cast %89 : vector<8xf32> to vector<8x1xf32>
    %91 = tpu.reciprocal %90 : vector<8x1xf32> -> vector<8x1xf32>
    %92 = vector.broadcast %91 : vector<8x1xf32> to vector<8x8xf32>
    %93 = arith.mulf %88, %92 : vector<8x8xf32>
    %94 = arith.truncf %93 : vector<8x8xf32> to vector<8x8xbf16>
    %cst_56 = arith.constant dense<0.000000e+00> : vector<8x8xf32>
    %95 = tpu.matmul %94, %80, %cst_56 {dimension_numbers = #tpu.dot_dimension_numbers<[1], [0], [0], [1], [0, 0, 1, 1], [], []>} : vector<8x8xbf16>, vector<8x8xbf16>, vector<8x8xf32> -> vector<8x8xf32>
    %96 = arith.truncf %95 : vector<8x8xf32> to vector<8x8xbf16>
    %c0_57 = arith.constant 0 : index
    %c24_58 = arith.constant 24 : index
    %97 = vector.load %arg11[%c0_57, %c24_58] : memref<8x32xbf16, #tpu.memory_space<vmem>>, vector<8x8xbf16>
    tpu.vector_store %arg11[%c0_57, %c24_58], %96 {strides = array<i32>} : memref<8x32xbf16, #tpu.memory_space<vmem>>, vector<8x8xbf16>,
    %c0_59 = arith.constant 0 : index
    %c0_60 = arith.constant 0 : index
    %98 = vector.load %arg11[%c0_59, %c0_60] : memref<8x32xbf16, #tpu.memory_space<vmem>>, vector<8x32xbf16>
    %c0_61 = arith.constant 0 : index
    %c0_62 = arith.constant 0 : index
    %99 = vector.load %arg6[%c0_61, %c0_62] : memref<32x128xbf16, #tpu.memory_space<vmem>>, vector<32x128xbf16>
    %cst_63 = arith.constant dense<0.000000e+00> : vector<8x128xf32>
    %100 = tpu.matmul %98, %99, %cst_63 {dimension_numbers = #tpu.dot_dimension_numbers<[1], [0], [0], [1], [0, 0, 1, 1], [], []>} : vector<8x32xbf16>, vector<32x128xbf16>, vector<8x128xf32> -> vector<8x128xf32>
    %c0_64 = arith.constant 0 : index
    %c0_65 = arith.constant 0 : index
    %101 = vector.load %arg7[%c0_64, %c0_65] : memref<1x128xf32, #tpu.memory_space<vmem>>, vector<1x128xf32>
    %102 = vector.broadcast %101 : vector<1x128xf32> to vector<8x128xf32>
    %103 = arith.addf %100, %102 : vector<8x128xf32>
    %c0_66 = arith.constant 0 : index
    %c0_67 = arith.constant 0 : index
    %c0_68 = arith.constant 0 : index
    %104 = vector.load %arg8[%c0_66, %c0_67, %c0_68] : memref<1x8x128xf32, #tpu.memory_space<vmem>>, vector<1x8x128xf32>
    %105 = vector.shape_cast %104 : vector<1x8x128xf32> to vector<8x128xf32>
    %106 = vector.shape_cast %103 : vector<8x128xf32> to vector<1x8x128xf32>
    tpu.vector_store %arg8[%c0_66, %c0_67, %c0_68], %106 {strides = array<i32>} : memref<1x8x128xf32, #tpu.memory_space<vmem>>, vector<1x8x128xf32>,
    return
  }
  func.func @transform_0(%arg0: i32, %arg1: i32) -> (i32, i32, i32) {
    %c0_i32 = arith.constant 0 : i32
    %c0_i32_0 = arith.constant 0 : i32
    return %arg0, %arg1, %c0_i32 : i32, i32, i32
  }
  func.func @transform_1(%arg0: i32, %arg1: i32) -> (i32, i32, i32) {
    %c0_i32 = arith.constant 0 : i32
    %c0_i32_0 = arith.constant 0 : i32
    %c0_i32_1 = arith.constant 0 : i32
    return %arg0, %c0_i32, %c0_i32_0 : i32, i32, i32
  }
  func.func @transform_2(%arg0: i32, %arg1: i32) -> (i32, i32) {
    %c0_i32 = arith.constant 0 : i32
    %c0_i32_0 = arith.constant 0 : i32
    %c0_i32_1 = arith.constant 0 : i32
    return %c0_i32, %c0_i32_0 : i32, i32
  }
  func.func @transform_3(%arg0: i32, %arg1: i32) -> (i32, i32) {
    %c0_i32 = arith.constant 0 : i32
    %c0_i32_0 = arith.constant 0 : i32
    %c0_i32_1 = arith.constant 0 : i32
    return %c0_i32, %c0_i32_0 : i32, i32
  }
  func.func @transform_4(%arg0: i32, %arg1: i32) -> (i32, i32) {
    %c0_i32 = arith.constant 0 : i32
    %c0_i32_0 = arith.constant 0 : i32
    %c0_i32_1 = arith.constant 0 : i32
    return %c0_i32, %c0_i32_0 : i32, i32
  }
  func.func @transform_5(%arg0: i32, %arg1: i32) -> (i32, i32) {
    %c0_i32 = arith.constant 0 : i32
    %c0_i32_0 = arith.constant 0 : i32
    %c0_i32_1 = arith.constant 0 : i32
    return %c0_i32, %c0_i32_0 : i32, i32
  }
  func.func @transform_6(%arg0: i32, %arg1: i32) -> (i32, i32, i32) {
    %c0_i32 = arith.constant 0 : i32
    %c0_i32_0 = arith.constant 0 : i32
    return %arg0, %arg1, %c0_i32 : i32, i32, i32
  }
}

</mosaic_0001>

<llo_original>
// kernel: tpu_custom_call.1
$region0: #{tpu_custom_call.1}
  #allocation0 [shape = 'u32[]', space=smem, size = 0x4, offset = 0x4, fixed_abs, tag = 'smem constant byte address 0x4 - core index']
  #allocation1 [shape = 'u32[144,128]{1,0:T(1,128)}', space=vmem, size = 0x12000, scoped, tag = 'internal scratch']
  #allocation2 [shape = 'bf16[8,32]{1,0:T(8,128)(2,1)}', space=vmem, size = 0x800, scoped, tag = 'scratch operand']
  #allocation3 [shape = 'bf16[8,64]{1,0:T(8,128)(2,1)}', space=vmem, size = 0x800, scoped, tag = 'scratch operand']
  #allocation4 [shape = 'bf16[8,32]{1,0:T(8,128)(2,1)}', space=vmem, size = 0x800, scoped, tag = 'scratch operand']
  %s0 = inlined_call_operand.hbm [shape: bf16[2,8,32], index: 0, kind: input, shape index: {}]
  %s1 = inlined_call_operand.hbm [shape: bf16[2,8,32], index: 1, kind: input, shape index: {}]
  %s2 = inlined_call_operand.hbm [shape: bf16[32,32], index: 2, kind: input, shape index: {}]
  %s3 = inlined_call_operand.hbm [shape: bf16[32,64], index: 3, kind: input, shape index: {}]
  %s4 = inlined_call_operand.hbm [shape: bf16[32,128], index: 4, kind: input, shape index: {}]
  %s5 = inlined_call_operand.hbm [shape: f32[1,128], index: 5, kind: input, shape index: {}]
  %s6 = inlined_call_operand.hbm [shape: f32[2,8,128], index: 6, kind: output, shape index: {}]
  %s7 = sld [smem:[#allocation0]]
  $region81: #{tpu_custom_call.1} parent=0
    _
  %s9 = ssub.s32 1, %s7
  %s10 = scalar_select 0, %s9, %s7
  $region1: #{tpu_custom_call.1} parent=0
    #allocation5 [shape = 'u8[4096]{0}', space=vmem, size = 0x1000, scoped, tag = 'input window, operand 0']
    #allocation6 [shape = 's32[2]{0}', space=sflag, size = 0x8, scoped, tag = 'scoped memory for tpu_custom_call.1']
    #allocation7 [shape = 's32[2]{0}', space=sflag, size = 0x8, scoped, tag = 'scoped memory for tpu_custom_call.1']
    #allocation8 [shape = 'u8[4096]{0}', space=vmem, size = 0x1000, scoped, tag = 'input window, operand 1']
    #allocation9 [shape = 's32[2]{0}', space=sflag, size = 0x8, scoped, tag = 'scoped memory for tpu_custom_call.1']
    #allocation10 [shape = 'u8[8192]{0}', space=vmem, size = 0x2000, scoped, tag = 'input window, operand 2, single buffered']
    #allocation11 [shape = 'u8[8192]{0}', space=vmem, size = 0x2000, scoped, tag = 'input window, operand 3, single buffered']
    #allocation12 [shape = 's32[1]{0}', space=sflag, size = 0x4, scoped, tag = 'scoped memory for tpu_custom_call.1']
    #allocation13 [shape = 'u8[8192]{0}', space=vmem, size = 0x2000, scoped, tag = 'input window, operand 4, single buffered']
    #allocation14 [shape = 'u8[512]{0}', space=vmem, size = 0x400, scoped, tag = 'input window, operand 5, single buffered']
    #allocation15 [shape = 's32[1]{0}', space=sflag, size = 0x4, scoped, tag = 'scoped memory for tpu_custom_call.1']
    #allocation16 [shape = 'u8[8192]{0}', space=vmem, size = 0x2000, scoped, tag = 'output window, operand 0']
    %11 = vsyncpa [#allocation6], 0
    %s12 = scalar_lea.sflag [#allocation6], 1
    %13 = vsyncpa %s12, 0
    %14 = vsyncpa [#allocation9], 0
    %s15 = scalar_lea.sflag [#allocation9], 1
    %16 = vsyncpa %s15, 0
    %17 = vsyncpa [#allocation12], 0
    %18 = vsyncpa [#allocation15], 0
    %19 = vsyncpa [#allocation7], 0
    %s20 = scalar_lea.sflag [#allocation7], 1
    %21 = vsyncpa %s20, 0
    loop: start=0, step=1, limit=4
    $region2: #{tpu_custom_call.1} parent=1 // loop_pre_header
      _
    $region3: #{tpu_custom_call.1} parent=1 // loop_header
      %s23 = sphi 0, %s27
      %p24 = scmp.ge.s32.totalorder %s23, 4
      %s30 = sphi 0, %s42
      %s31 = sphi 0, %s38
      %s32 = sphi 0, %s30
      %s33 = sphi 0, %s31
      %s34 = sphi 0, %s32
      %s35 = sphi 0, %s33
      %s47 = sphi 0, %s49
      %s50 = sphi 0, %s47
      %s51 = sphi 0, %s50
      %s67 = sphi 0, %s51
      %s73 = sphi 0, %s75
      %s76 = sphi 0, %s73
      %s77 = sphi 0, %s76
      %s93 = sphi 0, %s77
      %s97 = sphi 0, %s97
      %s99 = sphi 0, %s97
      %s100 = sphi 0, %s99
      %s114 = sphi 0, %s100
      %s118 = sphi 0, %s118
      %s120 = sphi 0, %s118
      %s121 = sphi 0, %s120
      %s135 = sphi 0, %s121
      %s139 = sphi 0, %s139
      %s141 = sphi 0, %s139
      %s142 = sphi 0, %s141
      %s156 = sphi 0, %s142
      %s160 = sphi 0, %s160
      %s162 = sphi 0, %s160
      %s163 = sphi 0, %s162
      %s177 = sphi 0, %s163
      %s185 = sphi 0, %s187
      %s188 = sphi 0, %s185
      %s189 = sphi 0, %s188
      %s205 = sphi 0, %s189
    $region4: #{tpu_custom_call.1} parent=1 // loop_header_branch
      %26 = sbr.rel (%p24) target = $region8
    $region5: #{tpu_custom_call.1} parent=1 // loop_body
      %s28 = ssub.s32 %s23, 1
      %s29 = ssub.s32 %s23, 2
      %s36 = sadd.s32 1, %s31
      %p37 = scmp.ge.s32.totalorder %s36, 1
      %s38 = scalar_select %p37, 0, %s36
      %s39 = sadd.s32 1, %s30
      %s40 = scalar_select %p37, %s39, %s30
      %p41 = scmp.ge.s32.totalorder %s40, 2
      %s42 = scalar_select %p41, 0, %s40
      %s43 = ssub.s32 %s30, %s42
      %s44 = ssub.s32 %s31, %s38
      %s45 = sor.u32 %s43, %s44
      %p46 = scmp.eq.s32.totalorder %s45, 0
      %s48 = sadd.s32 %s47, 1
      %s49 = scalar_select %p46, %s47, %s48
      %p52 = pneg %p46
      %p53 = scmp.eq.s32.totalorder %s23, 1
      %p54 = por %p52, %p53
      %p55 = scmp.ne.s32.totalorder %s47, %s50
      %p56 = scmp.eq.s32.totalorder %s23, 0
      %p57 = por %p55, %p56
      %p58 = scmp.ne.s32.totalorder %s47, %s50
      %p59 = scmp.eq.s32.totalorder %s28, 1
      %p60 = por %p58, %p59
      %p61 = scmp.ne.s32.totalorder %s50, %s51
      %p62 = scmp.eq.s32.totalorder %s28, 0
      %p63 = por %p61, %p62
      %p64 = scmp.ne.s32.totalorder %s50, %s51
      %p65 = scmp.eq.s32.totalorder %s29, 1
      %p66 = por %p64, %p65
      %p68 = scmp.ne.s32.totalorder %s51, %s67
      %p69 = scmp.eq.s32.totalorder %s29, 0
      %p70 = por %p68, %p69
      %s71 = ssub.s32 %s30, %s42
      %p72 = scmp.eq.s32.totalorder %s71, 0
      %s74 = sadd.s32 %s73, 1
      %s75 = scalar_select %p72, %s73, %s74
      %p78 = pneg %p72
      %p79 = scmp.eq.s32.totalorder %s23, 1
      %p80 = por %p78, %p79
      %p81 = scmp.ne.s32.totalorder %s73, %s76
      %p82 = scmp.eq.s32.totalorder %s23, 0
      %p83 = por %p81, %p82
      %p84 = scmp.ne.s32.totalorder %s73, %s76
      %p85 = scmp.eq.s32.totalorder %s28, 1
      %p86 = por %p84, %p85
      %p87 = scmp.ne.s32.totalorder %s76, %s77
      %p88 = scmp.eq.s32.totalorder %s28, 0
      %p89 = por %p87, %p88
      %p90 = scmp.ne.s32.totalorder %s76, %s77
      %p91 = scmp.eq.s32.totalorder %s29, 1
      %p92 = por %p90, %p91
      %p94 = scmp.ne.s32.totalorder %s77, %s93
      %p95 = scmp.eq.s32.totalorder %s29, 0
      %p96 = por %p94, %p95
      %s98 = sadd.s32 %s97, 1
      %p101 = scmp.eq.s32.totalorder %s23, 1
      %p102 = scmp.ne.s32.totalorder %s97, %s99
      %p103 = scmp.eq.s32.totalorder %s23, 0
      %p104 = por %p102, %p103
      %p105 = scmp.ne.s32.totalorder %s97, %s99
      %p106 = scmp.eq.s32.totalorder %s28, 1
      %p107 = por %p105, %p106
      %p108 = scmp.ne.s32.totalorder %s99, %s100
      %p109 = scmp.eq.s32.totalorder %s28, 0
      %p110 = por %p108, %p109
      %p111 = scmp.ne.s32.totalorder %s99, %s100
      %p112 = scmp.eq.s32.totalorder %s29, 1
      %p113 = por %p111, %p112
      %p115 = scmp.ne.s32.totalorder %s100, %s114
      %p116 = scmp.eq.s32.totalorder %s29, 0
      %p117 = por %p115, %p116
      %s119 = sadd.s32 %s118, 1
      %p122 = scmp.eq.s32.totalorder %s23, 1
      %p123 = scmp.ne.s32.totalorder %s118, %s120
      %p124 = scmp.eq.s32.totalorder %s23, 0
      %p125 = por %p123, %p124
      %p126 = scmp.ne.s32.totalorder %s118, %s120
      %p127 = scmp.eq.s32.totalorder %s28, 1
      %p128 = por %p126, %p127
      %p129 = scmp.ne.s32.totalorder %s120, %s121
      %p130 = scmp.eq.s32.totalorder %s28, 0
      %p131 = por %p129, %p130
      %p132 = scmp.ne.s32.totalorder %s120, %s121
      %p133 = scmp.eq.s32.totalorder %s29, 1
      %p134 = por %p132, %p133
      %p136 = scmp.ne.s32.totalorder %s121, %s135
      %p137 = scmp.eq.s32.totalorder %s29, 0
      %p138 = por %p136, %p137
      %s140 = sadd.s32 %s139, 1
      %p143 = scmp.eq.s32.totalorder %s23, 1
      %p144 = scmp.ne.s32.totalorder %s139, %s141
      %p145 = scmp.eq.s32.totalorder %s23, 0
      %p146 = por %p144, %p145
      %p147 = scmp.ne.s32.totalorder %s139, %s141
      %p148 = scmp.eq.s32.totalorder %s28, 1
      %p149 = por %p147, %p148
      %p150 = scmp.ne.s32.totalorder %s141, %s142
      %p151 = scmp.eq.s32.totalorder %s28, 0
      %p152 = por %p150, %p151
      %p153 = scmp.ne.s32.totalorder %s141, %s142
      %p154 = scmp.eq.s32.totalorder %s29, 1
      %p155 = por %p153, %p154
      %p157 = scmp.ne.s32.totalorder %s142, %s156
      %p158 = scmp.eq.s32.totalorder %s29, 0
      %p159 = por %p157, %p158
      %s161 = sadd.s32 %s160, 1
      %p164 = scmp.eq.s32.totalorder %s23, 1
      %p165 = scmp.ne.s32.totalorder %s160, %s162
      %p166 = scmp.eq.s32.totalorder %s23, 0
      %p167 = por %p165, %p166
      %p168 = scmp.ne.s32.totalorder %s160, %s162
      %p169 = scmp.eq.s32.totalorder %s28, 1
      %p170 = por %p168, %p169
      %p171 = scmp.ne.s32.totalorder %s162, %s163
      %p172 = scmp.eq.s32.totalorder %s28, 0
      %p173 = por %p171, %p172
      %p174 = scmp.ne.s32.totalorder %s162, %s163
      %p175 = scmp.eq.s32.totalorder %s29, 1
      %p176 = por %p174, %p175
      %p178 = scmp.ne.s32.totalorder %s163, %s177
      %p179 = scmp.eq.s32.totalorder %s29, 0
      %p180 = por %p178, %p179
      %s181 = ssub.s32 %s30, %s42
      %s182 = ssub.s32 %s31, %s38
      %s183 = sor.u32 %s181, %s182
      %p184 = scmp.eq.s32.totalorder %s183, 0
      %s186 = sadd.s32 %s185, 1
      %s187 = scalar_select %p184, %s185, %s186
      %p190 = pneg %p184
      %p191 = scmp.eq.s32.totalorder %s23, 1
      %p192 = por %p190, %p191
      %p193 = scmp.ne.s32.totalorder %s185, %s188
      %p194 = scmp.eq.s32.totalorder %s23, 0
      %p195 = por %p193, %p194
      %p196 = scmp.ne.s32.totalorder %s185, %s188
      %p197 = scmp.eq.s32.totalorder %s28, 1
      %p198 = por %p196, %p197
      %p199 = scmp.ne.s32.totalorder %s188, %s189
      %p200 = scmp.eq.s32.totalorder %s28, 0
      %p201 = por %p199, %p200
      %p202 = scmp.ne.s32.totalorder %s188, %s189
      %p203 = scmp.eq.s32.totalorder %s29, 1
      %p204 = por %p202, %p203
      %p206 = scmp.ne.s32.totalorder %s189, %s205
      %p207 = scmp.eq.s32.totalorder %s29, 0
      %p208 = por %p206, %p207
      %p209 = scmp.le.s32.totalorder 1, %s23
      %p210 = scmp.lt.s32.totalorder %s23, 3
      %p211 = pnand %p209, %p210
      %p212 = pneg %p211
      // Predicated region
      $region9: #{tpu_custom_call.1} parent=5 // pred_check
        _
      $region10: #{tpu_custom_call.1} parent=5 // pred_check_branch
        %214 = sbr.rel (%p211) target = $region12
      $region11: #{tpu_custom_call.1} parent=5 // pred_region
        %s215 = ssub.s32 %s23, 1
        // Predicated region
        $region13: #{tpu_custom_call.1} parent=11 // pred_check
          %p216 = pneg %p110
        $region14: #{tpu_custom_call.1} parent=11 // pred_check_branch
          %218 = sbr.rel (%p216) target = $region16
        $region15: #{tpu_custom_call.1} parent=11 // pred_region
          %s220 = ssub.s32 256, 256
          %221 = vsyncadd [#allocation9], %s220
          %s222 = sshll.u32 [#allocation10], 4
          %s223 = int_to_ptr.vmem [resolvable:$true] %s222
          %228 = dma.hbm_to_vmem [thread:$0]  %s2, 256, %s223, [#allocation9], 64, 64, 4
        $region16: #{tpu_custom_call.1} parent=11 // pred_fallthru
          _
        // Predicated region
        $region17: #{tpu_custom_call.1} parent=11 // pred_check
          %p229 = pneg %p131
        $region18: #{tpu_custom_call.1} parent=11 // pred_check_branch
          %231 = sbr.rel (%p229) target = $region20
        $region19: #{tpu_custom_call.1} parent=11 // pred_region
          %s233 = ssub.s32 256, 256
          %234 = vsyncadd [#allocation12], %s233
          %s235 = sshll.u32 [#allocation11], 4
          %s236 = int_to_ptr.vmem [resolvable:$true] %s235
          %241 = dma.hbm_to_vmem [thread:$0]  %s3, 256, %s236, [#allocation12], 64, 64, 4
        $region20: #{tpu_custom_call.1} parent=11 // pred_fallthru
          _
        // Predicated region
        $region21: #{tpu_custom_call.1} parent=11 // pred_check
          %p242 = pneg %p152
        $region22: #{tpu_custom_call.1} parent=11 // pred_check_branch
          %244 = sbr.rel (%p242) target = $region24
        $region23: #{tpu_custom_call.1} parent=11 // pred_region
          %s246 = ssub.s32 256, 256
          %247 = vsyncadd [#allocation12], %s246
          %s248 = sshll.u32 [#allocation13], 4
          %s249 = int_to_ptr.vmem [resolvable:$true] %s248
          %254 = dma.hbm_to_vmem [thread:$0]  %s4, 256, %s249, [#allocation12], 64, 64, 4
        $region24: #{tpu_custom_call.1} parent=11 // pred_fallthru
          _
        // Predicated region
        $region25: #{tpu_custom_call.1} parent=11 // pred_check
          %p255 = pneg %p173
        $region26: #{tpu_custom_call.1} parent=11 // pred_check_branch
          %257 = sbr.rel (%p255) target = $region28
        $region27: #{tpu_custom_call.1} parent=11 // pred_region
          %s259 = ssub.s32 16, 16
          %260 = vsyncadd [#allocation15], %s259
          %s262 = sshll.u32 [#allocation14], 4
          %s263 = int_to_ptr.vmem [resolvable:$true] %s262
          %265 = dma.hbm_to_vmem [thread:$0]  %s5, 16, %s263, [#allocation15]
        $region28: #{tpu_custom_call.1} parent=11 // pred_fallthru
          _
      $region12: #{tpu_custom_call.1} parent=5 // pred_fallthru
        _
      %p266 = scmp.lt.s32.totalorder %s23, 2
      // Predicated region
      $region29: #{tpu_custom_call.1} parent=5 // pred_check
        %p267 = pneg %p266
      $region30: #{tpu_custom_call.1} parent=5 // pred_check_branch
        %269 = sbr.rel (%p267) target = $region32
      $region31: #{tpu_custom_call.1} parent=5 // pred_region
        // Predicated region
        $region33: #{tpu_custom_call.1} parent=31 // pred_check
          %p270 = pneg %p57
        $region34: #{tpu_custom_call.1} parent=31 // pred_check_branch
          %272 = sbr.rel (%p270) target = $region36
        $region35: #{tpu_custom_call.1} parent=31 // pred_region
          %s273 = sand.u32 %s47, 1
          %s274 = scalar_lea.sflag [#allocation6], %s273
          %s275 = sand.u32 %s47, 1
          %s276 = smul.addr %s275, 4
          %s277 = scalar_lea.vmem [#allocation5], %s276
          %s279 = ssub.s32 64, 64
          %280 = vsyncadd %s274, %s279
          %s281 = sadd.s32 %s31, %s30
          %s282 = smul.addr %s281, 64
          %s283 = scalar_lea.hbm %s0, %s282
          %s285 = sshll.u32 %s277, 4
          %s286 = int_to_ptr.vmem [resolvable:$true] %s285
          %288 = dma.hbm_to_vmem [thread:$0]  %s283, 64, %s286, %s274
        $region36: #{tpu_custom_call.1} parent=31 // pred_fallthru
          _
        // Predicated region
        $region37: #{tpu_custom_call.1} parent=31 // pred_check
          %p289 = pneg %p83
        $region38: #{tpu_custom_call.1} parent=31 // pred_check_branch
          %291 = sbr.rel (%p289) target = $region40
        $region39: #{tpu_custom_call.1} parent=31 // pred_region
          %s292 = sand.u32 %s23, 1
          %s293 = scalar_lea.sflag [#allocation9], %s292
          %s294 = sand.u32 %s73, 1
          %s295 = smul.addr %s294, 4
          %s296 = scalar_lea.vmem [#allocation8], %s295
          %s298 = ssub.s32 64, 64
          %299 = vsyncadd %s293, %s298
          %s300 = smul.addr %s30, 64
          %s301 = scalar_lea.hbm %s1, %s300
          %s303 = sshll.u32 %s296, 4
          %s304 = int_to_ptr.vmem [resolvable:$true] %s303
          %306 = dma.hbm_to_vmem [thread:$0]  %s301, 64, %s304, %s293
        $region40: #{tpu_custom_call.1} parent=31 // pred_fallthru
          _
      $region32: #{tpu_custom_call.1} parent=5 // pred_fallthru
        _
      %p307 = scmp.le.s32.totalorder 1, %s23
      %p308 = scmp.lt.s32.totalorder %s23, 3
      %p309 = pnand %p307, %p308
      %p310 = pneg %p309
      // Predicated region
      $region41: #{tpu_custom_call.1} parent=5 // pred_check
        _
      $region42: #{tpu_custom_call.1} parent=5 // pred_check_branch
        %312 = sbr.rel (%p309) target = $region44
      $region43: #{tpu_custom_call.1} parent=5 // pred_region
        %s313 = ssub.s32 %s23, 1
        %s314 = sand.u32 %s50, 1
        %s315 = scalar_lea.sflag [#allocation6], %s314
        %s316 = sand.u32 %s50, 1
        %s317 = smul.addr %s316, 4
        %s318 = scalar_lea.vmem [#allocation5], %s317
        // Predicated region
        $region45: #{tpu_custom_call.1} parent=43 // pred_check
          %p319 = pneg %p63
        $region46: #{tpu_custom_call.1} parent=43 // pred_check_branch
          %321 = sbr.rel (%p319) target = $region48
        $region47: #{tpu_custom_call.1} parent=43 // pred_region
          %322 = dma.done %s315, 64
        $region48: #{tpu_custom_call.1} parent=43 // pred_fallthru
          _
        %s323 = sand.u32 %s28, 1
        %s324 = scalar_lea.sflag [#allocation9], %s323
        %s325 = sand.u32 %s76, 1
        %s326 = smul.addr %s325, 4
        %s327 = scalar_lea.vmem [#allocation8], %s326
        // Predicated region
        $region49: #{tpu_custom_call.1} parent=43 // pred_check
          %p328 = pneg %p89
        $region50: #{tpu_custom_call.1} parent=43 // pred_check_branch
          %330 = sbr.rel (%p328) target = $region52
        $region51: #{tpu_custom_call.1} parent=43 // pred_region
          %331 = dma.done %s324, 64
        $region52: #{tpu_custom_call.1} parent=43 // pred_fallthru
          _
        // Predicated region
        $region53: #{tpu_custom_call.1} parent=43 // pred_check
          %p332 = pneg %p110
        $region54: #{tpu_custom_call.1} parent=43 // pred_check_branch
          %334 = sbr.rel (%p332) target = $region56
        $region55: #{tpu_custom_call.1} parent=43 // pred_region
          %335 = dma.done [#allocation9], 256
        $region56: #{tpu_custom_call.1} parent=43 // pred_fallthru
          _
        // Predicated region
        $region57: #{tpu_custom_call.1} parent=43 // pred_check
          %p336 = pneg %p131
        $region58: #{tpu_custom_call.1} parent=43 // pred_check_branch
          %338 = sbr.rel (%p336) target = $region60
        $region59: #{tpu_custom_call.1} parent=43 // pred_region
          %339 = dma.done [#allocation12], 256
        $region60: #{tpu_custom_call.1} parent=43 // pred_fallthru
          _
        // Predicated region
        $region61: #{tpu_custom_call.1} parent=43 // pred_check
          %p340 = pneg %p152
        $region62: #{tpu_custom_call.1} parent=43 // pred_check_branch
          %342 = sbr.rel (%p340) target = $region64
        $region63: #{tpu_custom_call.1} parent=43 // pred_region
          %343 = dma.done [#allocation12], 256
        $region64: #{tpu_custom_call.1} parent=43 // pred_fallthru
          _
        // Predicated region
        $region65: #{tpu_custom_call.1} parent=43 // pred_check
          %p344 = pneg %p173
        $region66: #{tpu_custom_call.1} parent=43 // pred_check_branch
          %346 = sbr.rel (%p344) target = $region68
        $region67: #{tpu_custom_call.1} parent=43 // pred_region
          %347 = dma.done [#allocation15], 16
        $region68: #{tpu_custom_call.1} parent=43 // pred_fallthru
          _
        %s348 = sand.u32 %s50, 1
        %s349 = scalar_lea.sflag [#allocation6], %s348
        %s350 = sand.u32 %s50, 1
        %s351 = smul.addr %s350, 4
        %s352 = scalar_lea.vmem [#allocation5], %s351
        %p353 = pneg %p63
        %p354 = pneg %p60
        %s355 = sand.u32 %s28, 1
        %s356 = scalar_lea.sflag [#allocation9], %s355
        %s357 = sand.u32 %s76, 1
        %s358 = smul.addr %s357, 4
        %s359 = scalar_lea.vmem [#allocation8], %s358
        %p360 = pneg %p89
        %p361 = pneg %p86
        %p362 = pneg %p110
        %p363 = pneg %p107
        %p364 = pneg %p131
        %p365 = pneg %p128
        %p366 = pneg %p152
        %p367 = pneg %p149
        %p368 = pneg %p173
        %p369 = pneg %p170
        %p370 = pneg %p201
        %p371 = pneg %p198
        %s372 = sand.u32 %s188, 1
        %s373 = scalar_lea.sflag [#allocation7], %s372
        %s374 = sand.u32 %s188, 1
        %s375 = smul.addr %s374, 8
        %s376 = scalar_lea.vmem [#allocation16], %s375
        %v378 = vld [vmem:[%s318] sm:$0xf]
        %v379 = vld [vmem:[#allocation10] sm:$0xf]
        %v380 = vld [vmem:[#allocation10 + $0x4] sm:$0xf]
        %v381 = vld [vmem:[#allocation10 + $0x8] sm:$0xf]
        %v382 = vld [vmem:[#allocation10 + $0xc] sm:$0xf]
        %v387 = vunpack.c.l.b16 %v379
        %v388 = vunpack.c.l.b16 %v380
        %v389 = vunpack.c.l.b16 %v381
        %v390 = vunpack.c.l.b16 %v382
        %v391 = vpack.c.b16 %v388, %v387
        %v392 = vpack.c.b16 %v390, %v389
        %vm395 = vcmask 261120
        %v397 = vsel %vm395, %v378, 0
        %399 = vmatprep.subr.bf16.mxu0 0
        %400 = vmatpush1.bf16.msra.mxu0 %v391
        %401 = vmatprep.subr.bf16.mxu0 0
        %402 = vmatpush1.bf16.msra.mxu0 %v392
        %403 = vmatprep.subr.bf16.mxu0 0
        %404 = vmatpush1.bf16.msra.mxu0 0
        %405 = vmatprep.subr.bf16.mxu0 0
        %406 = vmatpush1.bf16.msra.mxu0 0
        %407 = vmatprep.subr.bf16.mxu0 0
        %408 = vmatpush1.bf16.msra.mxu0 0
        %409 = vmatprep.subr.bf16.mxu0 0
        %410 = vmatpush1.bf16.msra.mxu0 0
        %411 = vmatprep.subr.bf16.mxu0 0
        %412 = vmatpush1.bf16.msra.mxu0 0
        %413 = vmatprep.subr.bf16.mxu0 0
        %414 = vmatpush1.bf16.msra.mxu0 0
        %415 = vmatprep.subr.bf16.mxu0 0
        %416 = vmatpush1.bf16.msra.mxu0 0
        %417 = vmatprep.subr.bf16.mxu0 0
        %418 = vmatpush1.bf16.msra.mxu0 0
        %419 = vmatprep.subr.bf16.mxu0 0
        %420 = vmatpush1.bf16.msra.mxu0 0
        %421 = vmatprep.subr.bf16.mxu0 0
        %422 = vmatpush1.bf16.msra.mxu0 0
        %423 = vmatprep.subr.bf16.mxu0 0
        %424 = vmatpush1.bf16.msra.mxu0 0
        %425 = vmatprep.subr.bf16.mxu0 0
        %426 = vmatpush1.bf16.msra.mxu0 0
        %427 = vmatprep.subr.bf16.mxu0 0
        %428 = vmatpush1.bf16.msra.mxu0 0
        %429 = vmatprep.subr.bf16.mxu0 0
        %430 = vmatpush1.bf16.msra.mxu0 0
        %431 = vmatprep.mubr.bf16.mxu0 0
        %432 = vmatmul.mubr.bf16.gmra.mrb[0].mxu0 %v397
        %v433 = vpop.f32.mrb[0].mxu0
        %v434 = vadd.f32 0.0, %v433
        %v435 = vpop.f32.mrb[0].mxu0
        %v436 = vpop.f32.mrb[0].mxu0
        %v437 = vpop.f32.mrb[0].mxu0
        %438 = vdwg.mxu0
        %v439 = vpack.c.bf16 %v434, %v434
        %vm440 = vcmask 257024
        %441 = vst.msk [vmem:[#allocation2] sm:$0xf] %vm440, %v439
        %v442 = vld [vmem:[%s327] sm:$0xf]
        %v443 = vld [vmem:[#allocation11] sm:$0xf]
        %v444 = vld [vmem:[#allocation11 + $0x4] sm:$0xf]
        %v445 = vld [vmem:[#allocation11 + $0x8] sm:$0xf]
        %v446 = vld [vmem:[#allocation11 + $0xc] sm:$0xf]
        %v451 = vunpack.c.l.b16 %v443
        %v452 = vunpack.c.l.b16 %v444
        %v453 = vunpack.c.l.b16 %v445
        %v454 = vunpack.c.l.b16 %v446
        %v455 = vpack.c.b16 %v452, %v451
        %v456 = vpack.c.b16 %v454, %v453
        %v460 = vsel %vm395, %v442, 0
        %462 = vmatprep.subr.bf16.mxu0 0
        %463 = vmatpush1.bf16.msra.mxu0 %v455
        %464 = vmatprep.subr.bf16.mxu0 0
        %465 = vmatpush1.bf16.msra.mxu0 %v456
        %466 = vmatprep.subr.bf16.mxu0 0
        %467 = vmatpush1.bf16.msra.mxu0 0
        %468 = vmatprep.subr.bf16.mxu0 0
        %469 = vmatpush1.bf16.msra.mxu0 0
        %470 = vmatprep.subr.bf16.mxu0 0
        %471 = vmatpush1.bf16.msra.mxu0 0
        %472 = vmatprep.subr.bf16.mxu0 0
        %473 = vmatpush1.bf16.msra.mxu0 0
        %474 = vmatprep.subr.bf16.mxu0 0
        %475 = vmatpush1.bf16.msra.mxu0 0
        %476 = vmatprep.subr.bf16.mxu0 0
        %477 = vmatpush1.bf16.msra.mxu0 0
        %478 = vmatprep.subr.bf16.mxu0 0
        %479 = vmatpush1.bf16.msra.mxu0 0
        %480 = vmatprep.subr.bf16.mxu0 0
        %481 = vmatpush1.bf16.msra.mxu0 0
        %482 = vmatprep.subr.bf16.mxu0 0
        %483 = vmatpush1.bf16.msra.mxu0 0
        %484 = vmatprep.subr.bf16.mxu0 0
        %485 = vmatpush1.bf16.msra.mxu0 0
        %486 = vmatprep.subr.bf16.mxu0 0
        %487 = vmatpush1.bf16.msra.mxu0 0
        %488 = vmatprep.subr.bf16.mxu0 0
        %489 = vmatpush1.bf16.msra.mxu0 0
        %490 = vmatprep.subr.bf16.mxu0 0
        %491 = vmatpush1.bf16.msra.mxu0 0
        %492 = vmatprep.subr.bf16.mxu0 0
        %493 = vmatpush1.bf16.msra.mxu0 0
        %494 = vmatprep.mubr.bf16.mxu0 0
        %495 = vmatmul.mubr.bf16.gmra.mrb[0].mxu0 %v460
        %v496 = vpop.f32.mrb[0].mxu0
        %v497 = vadd.f32 0.0, %v496
        %v498 = vpop.f32.mrb[0].mxu0
        %v499 = vpop.f32.mrb[0].mxu0
        %v500 = vpop.f32.mrb[0].mxu0
        %501 = vdwg.mxu0
        %v502 = vpack.c.bf16 %v497, %v497
        %vm503 = vcmask 519168
        %504 = vst.msk [vmem:[#allocation3] sm:$0xf] %vm503, %v502
        %s505 = smul.u32 %s33, 8
        %v506 = vlaneseq
        %v507 = vshrl.u32 %v506, 7
        %v508 = vstv %s505
        %v509 = vadd.s32 %v508, %v507
        %v510 = vlaneseq
        %v511 = vand.u32 %v510, 127
        %vm512 = vcmp.le.s32.totalorder %v511, %v509
        %v513 = vld [vmem:[#allocation2] sm:$0xf]
        %v514 = vld [vmem:[#allocation3] sm:$0xf]
        %vm515 = vcmask 64512
        %v517 = vsel %vm515, %v513, 0
        %v520 = vsel %vm515, %v514, 0
        %522 = vmatprep.subr.bf16.mxu0 0
        %523 = vmatpush1.bf16.xpose.msra.mxu0 %v520
        %524 = vmatprep.subr.bf16.mxu0 0
        %525 = vmatpush1.bf16.xpose.msra.mxu0 0
        %526 = vmatprep.subr.bf16.mxu0 0
        %527 = vmatpush1.bf16.xpose.msra.mxu0 0
        %528 = vmatprep.subr.bf16.mxu0 0
        %529 = vmatpush1.bf16.xpose.msra.mxu0 0
        %530 = vmatprep.subr.bf16.mxu0 0
        %531 = vmatpush1.bf16.xpose.msra.mxu0 0
        %532 = vmatprep.subr.bf16.mxu0 0
        %533 = vmatpush1.bf16.xpose.msra.mxu0 0
        %534 = vmatprep.subr.bf16.mxu0 0
        %535 = vmatpush1.bf16.xpose.msra.mxu0 0
        %536 = vmatprep.subr.bf16.mxu0 0
        %537 = vmatpush1.bf16.xpose.msra.mxu0 0
        %538 = vmatprep.subr.bf16.mxu0 0
        %539 = vmatpush1.bf16.xpose.msra.mxu0 0
        %540 = vmatprep.subr.bf16.mxu0 0
        %541 = vmatpush1.bf16.xpose.msra.mxu0 0
        %542 = vmatprep.subr.bf16.mxu0 0
        %543 = vmatpush1.bf16.xpose.msra.mxu0 0
        %544 = vmatprep.subr.bf16.mxu0 0
        %545 = vmatpush1.bf16.xpose.msra.mxu0 0
        %546 = vmatprep.subr.bf16.mxu0 0
        %547 = vmatpush1.bf16.xpose.msra.mxu0 0
        %548 = vmatprep.subr.bf16.mxu0 0
        %549 = vmatpush1.bf16.xpose.msra.mxu0 0
        %550 = vmatprep.subr.bf16.mxu0 0
        %551 = vmatpush1.bf16.xpose.msra.mxu0 0
        %552 = vmatprep.subr.bf16.mxu0 0
        %553 = vmatpush1.bf16.xpose.msra.mxu0 0
        %554 = vmatprep.mubr.bf16.mxu0 0
        %555 = vmatmul.mubr.bf16.gmra.mrb[0].mxu0 %v517
        %v556 = vpop.f32.mrb[0].mxu0
        %v557 = vadd.f32 0.0, %v556
        %v558 = vpop.f32.mrb[0].mxu0
        %v559 = vpop.f32.mrb[0].mxu0
        %v560 = vpop.f32.mrb[0].mxu0
        %561 = vdwg.mxu0
        %v562 = vsel %vm512, %v557, -1e+30
        %v563 = vsel %vm515, %v562, -inf
        %564 = vmax.xlane.f32.xlu0 %v563
        %v565 = vpop.xlane.xlu0 %564
        %v566 = vsub.f32 %v562, %v565
        %v567 = vmul.f32 %v566, 1.442695
        %v568 = vpow.pop %v567
        %v569 = vsel %vm515, %v568, 0.0
        %570 = vadd.xlane.f32.xlu0 %v569
        %v571 = vpop.xlane.xlu0 %570
        %v572 = vrcp.pop %v571
        %v573 = vmul.f32 %v568, %v572
        %v574 = vpack.c.bf16 %v573, %v573
        %v576 = vunpack.c.l.b16 %v514
        %v577 = vpack.c.b16 %v576, %v576
        %578 = vrot.lane.b32.xlu0 %v577, 96
        %v579 = vpop.permute.xlu0 %578
        %v581 = vsel %vm515, %v574, 0
        %vm583 = vcmask 1043456
        %v585 = vsel %vm583, %v579, 0
        %587 = vmatprep.subr.bf16.mxu0 0
        %588 = vmatpush1.bf16.msra.mxu0 %v585
        %589 = vmatprep.subr.bf16.mxu0 0
        %590 = vmatpush1.bf16.msra.mxu0 0
        %591 = vmatprep.subr.bf16.mxu0 0
        %592 = vmatpush1.bf16.msra.mxu0 0
        %593 = vmatprep.subr.bf16.mxu0 0
        %594 = vmatpush1.bf16.msra.mxu0 0
        %595 = vmatprep.subr.bf16.mxu0 0
        %596 = vmatpush1.bf16.msra.mxu0 0
        %597 = vmatprep.subr.bf16.mxu0 0
        %598 = vmatpush1.bf16.msra.mxu0 0
        %599 = vmatprep.subr.bf16.mxu0 0
        %600 = vmatpush1.bf16.msra.mxu0 0
        %601 = vmatprep.subr.bf16.mxu0 0
        %602 = vmatpush1.bf16.msra.mxu0 0
        %603 = vmatprep.subr.bf16.mxu0 0
        %604 = vmatpush1.bf16.msra.mxu0 0
        %605 = vmatprep.subr.bf16.mxu0 0
        %606 = vmatpush1.bf16.msra.mxu0 0
        %607 = vmatprep.subr.bf16.mxu0 0
        %608 = vmatpush1.bf16.msra.mxu0 0
        %609 = vmatprep.subr.bf16.mxu0 0
        %610 = vmatpush1.bf16.msra.mxu0 0
        %611 = vmatprep.subr.bf16.mxu0 0
        %612 = vmatpush1.bf16.msra.mxu0 0
        %613 = vmatprep.subr.bf16.mxu0 0
        %614 = vmatpush1.bf16.msra.mxu0 0
        %615 = vmatprep.subr.bf16.mxu0 0
        %616 = vmatpush1.bf16.msra.mxu0 0
        %617 = vmatprep.subr.bf16.mxu0 0
        %618 = vmatpush1.bf16.msra.mxu0 0
        %619 = vmatprep.mubr.bf16.mxu0 0
        %620 = vmatmul.mubr.bf16.gmra.mrb[0].mxu0 %v581
        %v621 = vpop.f32.mrb[0].mxu0
        %v622 = vadd.f32 0.0, %v621
        %v623 = vpop.f32.mrb[0].mxu0
        %v624 = vpop.f32.mrb[0].mxu0
        %v625 = vpop.f32.mrb[0].mxu0
        %626 = vdwg.mxu0
        %v627 = vpack.c.bf16 %v622, %v622
        %vm628 = vcmask 60416
        %629 = vst.msk [vmem:[#allocation4] sm:$0xf] %vm628, %v627
        %v630 = vld [vmem:[#allocation2] sm:$0xf]
        %v631 = vld [vmem:[#allocation3] sm:$0xf]
        %v633 = vunpack.c.l.b16 %v630
        %v634 = vpack.c.b16 %v633, %v633
        %635 = vrot.lane.b32.xlu0 %v634, 120
        %v636 = vpop.permute.xlu0 %635
        %v638 = vunpack.c.l.b16 %v631
        %v639 = vpack.c.b16 %v638, %v638
        %640 = vrot.lane.b32.xlu0 %v639, 120
        %v641 = vpop.permute.xlu0 %640
        %v643 = vsel %vm515, %v636, 0
        %v646 = vsel %vm515, %v641, 0
        %648 = vmatprep.subr.bf16.mxu0 0
        %649 = vmatpush1.bf16.xpose.msra.mxu0 %v646
        %650 = vmatprep.subr.bf16.mxu0 0
        %651 = vmatpush1.bf16.xpose.msra.mxu0 0
        %652 = vmatprep.subr.bf16.mxu0 0
        %653 = vmatpush1.bf16.xpose.msra.mxu0 0
        %654 = vmatprep.subr.bf16.mxu0 0
        %655 = vmatpush1.bf16.xpose.msra.mxu0 0
        %656 = vmatprep.subr.bf16.mxu0 0
        %657 = vmatpush1.bf16.xpose.msra.mxu0 0
        %658 = vmatprep.subr.bf16.mxu0 0
        %659 = vmatpush1.bf16.xpose.msra.mxu0 0
        %660 = vmatprep.subr.bf16.mxu0 0
        %661 = vmatpush1.bf16.xpose.msra.mxu0 0
        %662 = vmatprep.subr.bf16.mxu0 0
        %663 = vmatpush1.bf16.xpose.msra.mxu0 0
        %664 = vmatprep.subr.bf16.mxu0 0
        %665 = vmatpush1.bf16.xpose.msra.mxu0 0
        %666 = vmatprep.subr.bf16.mxu0 0
        %667 = vmatpush1.bf16.xpose.msra.mxu0 0
        %668 = vmatprep.subr.bf16.mxu0 0
        %669 = vmatpush1.bf16.xpose.msra.mxu0 0
        %670 = vmatprep.subr.bf16.mxu0 0
        %671 = vmatpush1.bf16.xpose.msra.mxu0 0
        %672 = vmatprep.subr.bf16.mxu0 0
        %673 = vmatpush1.bf16.xpose.msra.mxu0 0
        %674 = vmatprep.subr.bf16.mxu0 0
        %675 = vmatpush1.bf16.xpose.msra.mxu0 0
        %676 = vmatprep.subr.bf16.mxu0 0
        %677 = vmatpush1.bf16.xpose.msra.mxu0 0
        %678 = vmatprep.subr.bf16.mxu0 0
        %679 = vmatpush1.bf16.xpose.msra.mxu0 0
        %680 = vmatprep.mubr.bf16.mxu0 0
        %681 = vmatmul.mubr.bf16.gmra.mrb[0].mxu0 %v643
        %v682 = vpop.f32.mrb[0].mxu0
        %v683 = vadd.f32 0.0, %v682
        %v684 = vpop.f32.mrb[0].mxu0
        %v685 = vpop.f32.mrb[0].mxu0
        %v686 = vpop.f32.mrb[0].mxu0
        %687 = vdwg.mxu0
        %v688 = vsel %vm512, %v683, -1e+30
        %v689 = vsel %vm515, %v688, -inf
        %690 = vmax.xlane.f32.xlu0 %v689
        %v691 = vpop.xlane.xlu0 %690
        %v692 = vsub.f32 %v688, %v691
        %v693 = vmul.f32 %v692, 1.442695
        %v694 = vpow.pop %v693
        %v695 = vsel %vm515, %v694, 0.0
        %696 = vadd.xlane.f32.xlu0 %v695
        %v697 = vpop.xlane.xlu0 %696
        %v698 = vrcp.pop %v697
        %v699 = vmul.f32 %v694, %v698
        %v700 = vpack.c.bf16 %v699, %v699
        %701 = vrot.lane.b32.xlu0 %v639, 88
        %v702 = vpop.permute.xlu0 %701
        %v704 = vsel %vm515, %v700, 0
        %v707 = vsel %vm583, %v702, 0
        %709 = vmatprep.subr.bf16.mxu0 0
        %710 = vmatpush1.bf16.msra.mxu0 %v707
        %711 = vmatprep.subr.bf16.mxu0 0
        %712 = vmatpush1.bf16.msra.mxu0 0
        %713 = vmatprep.subr.bf16.mxu0 0
        %714 = vmatpush1.bf16.msra.mxu0 0
        %715 = vmatprep.subr.bf16.mxu0 0
        %716 = vmatpush1.bf16.msra.mxu0 0
        %717 = vmatprep.subr.bf16.mxu0 0
        %718 = vmatpush1.bf16.msra.mxu0 0
        %719 = vmatprep.subr.bf16.mxu0 0
        %720 = vmatpush1.bf16.msra.mxu0 0
        %721 = vmatprep.subr.bf16.mxu0 0
        %722 = vmatpush1.bf16.msra.mxu0 0
        %723 = vmatprep.subr.bf16.mxu0 0
        %724 = vmatpush1.bf16.msra.mxu0 0
        %725 = vmatprep.subr.bf16.mxu0 0
        %726 = vmatpush1.bf16.msra.mxu0 0
        %727 = vmatprep.subr.bf16.mxu0 0
        %728 = vmatpush1.bf16.msra.mxu0 0
        %729 = vmatprep.subr.bf16.mxu0 0
        %730 = vmatpush1.bf16.msra.mxu0 0
        %731 = vmatprep.subr.bf16.mxu0 0
        %732 = vmatpush1.bf16.msra.mxu0 0
        %733 = vmatprep.subr.bf16.mxu0 0
        %734 = vmatpush1.bf16.msra.mxu0 0
        %735 = vmatprep.subr.bf16.mxu0 0
        %736 = vmatpush1.bf16.msra.mxu0 0
        %737 = vmatprep.subr.bf16.mxu0 0
        %738 = vmatpush1.bf16.msra.mxu0 0
        %739 = vmatprep.subr.bf16.mxu0 0
        %740 = vmatpush1.bf16.msra.mxu0 0
        %741 = vmatprep.mubr.bf16.mxu0 0
        %742 = vmatmul.mubr.bf16.gmra.mrb[0].mxu0 %v704
        %v743 = vpop.f32.mrb[0].mxu0
        %v744 = vadd.f32 0.0, %v743
        %v745 = vpop.f32.mrb[0].mxu0
        %v746 = vpop.f32.mrb[0].mxu0
        %v747 = vpop.f32.mrb[0].mxu0
        %748 = vdwg.mxu0
        %v749 = vpack.c.bf16 %v744, %v744
        %v751 = vunpack.c.l.b16 %v749
        %v752 = vpack.c.b16 %v751, %v751
        %753 = vrot.lane.b32.xlu0 %v752, 8
        %v754 = vpop.permute.xlu0 %753
        %vm756 = vcmask 126016
        %757 = vst.msk [vmem:[#allocation4] sm:$0xf] %vm756, %v754
        %v758 = vld [vmem:[#allocation2] sm:$0xf]
        %v759 = vld [vmem:[#allocation3] sm:$0xf]
        %v761 = vunpack.c.l.b16 %v758
        %v762 = vpack.c.b16 %v761, %v761
        %763 = vrot.lane.b32.xlu0 %v762, 112
        %v764 = vpop.permute.xlu0 %763
        %v766 = vunpack.c.l.b16 %v759
        %v767 = vpack.c.b16 %v766, %v766
        %768 = vrot.lane.b32.xlu0 %v767, 112
        %v769 = vpop.permute.xlu0 %768
        %v771 = vsel %vm515, %v764, 0
        %v774 = vsel %vm515, %v769, 0
        %776 = vmatprep.subr.bf16.mxu0 0
        %777 = vmatpush1.bf16.xpose.msra.mxu0 %v774
        %778 = vmatprep.subr.bf16.mxu0 0
        %779 = vmatpush1.bf16.xpose.msra.mxu0 0
        %780 = vmatprep.subr.bf16.mxu0 0
        %781 = vmatpush1.bf16.xpose.msra.mxu0 0
        %782 = vmatprep.subr.bf16.mxu0 0
        %783 = vmatpush1.bf16.xpose.msra.mxu0 0
        %784 = vmatprep.subr.bf16.mxu0 0
        %785 = vmatpush1.bf16.xpose.msra.mxu0 0
        %786 = vmatprep.subr.bf16.mxu0 0
        %787 = vmatpush1.bf16.xpose.msra.mxu0 0
        %788 = vmatprep.subr.bf16.mxu0 0
        %789 = vmatpush1.bf16.xpose.msra.mxu0 0
        %790 = vmatprep.subr.bf16.mxu0 0
        %791 = vmatpush1.bf16.xpose.msra.mxu0 0
        %792 = vmatprep.subr.bf16.mxu0 0
        %793 = vmatpush1.bf16.xpose.msra.mxu0 0
        %794 = vmatprep.subr.bf16.mxu0 0
        %795 = vmatpush1.bf16.xpose.msra.mxu0 0
        %796 = vmatprep.subr.bf16.mxu0 0
        %797 = vmatpush1.bf16.xpose.msra.mxu0 0
        %798 = vmatprep.subr.bf16.mxu0 0
        %799 = vmatpush1.bf16.xpose.msra.mxu0 0
        %800 = vmatprep.subr.bf16.mxu0 0
        %801 = vmatpush1.bf16.xpose.msra.mxu0 0
        %802 = vmatprep.subr.bf16.mxu0 0
        %803 = vmatpush1.bf16.xpose.msra.mxu0 0
        %804 = vmatprep.subr.bf16.mxu0 0
        %805 = vmatpush1.bf16.xpose.msra.mxu0 0
        %806 = vmatprep.subr.bf16.mxu0 0
        %807 = vmatpush1.bf16.xpose.msra.mxu0 0
        %808 = vmatprep.mubr.bf16.mxu0 0
        %809 = vmatmul.mubr.bf16.gmra.mrb[0].mxu0 %v771
        %v810 = vpop.f32.mrb[0].mxu0
        %v811 = vadd.f32 0.0, %v810
        %v812 = vpop.f32.mrb[0].mxu0
        %v813 = vpop.f32.mrb[0].mxu0
        %v814 = vpop.f32.mrb[0].mxu0
        %815 = vdwg.mxu0
        %v816 = vsel %vm512, %v811, -1e+30
        %v817 = vsel %vm515, %v816, -inf
        %818 = vmax.xlane.f32.xlu0 %v817
        %v819 = vpop.xlane.xlu0 %818
        %v820 = vsub.f32 %v816, %v819
        %v821 = vmul.f32 %v820, 1.442695
        %v822 = vpow.pop %v821
        %v823 = vsel %vm515, %v822, 0.0
        %824 = vadd.xlane.f32.xlu0 %v823
        %v825 = vpop.xlane.xlu0 %824
        %v826 = vrcp.pop %v825
        %v827 = vmul.f32 %v822, %v826
        %v828 = vpack.c.bf16 %v827, %v827
        %829 = vrot.lane.b32.xlu0 %v767, 80
        %v830 = vpop.permute.xlu0 %829
        %v832 = vsel %vm515, %v828, 0
        %v835 = vsel %vm583, %v830, 0
        %837 = vmatprep.subr.bf16.mxu0 0
        %838 = vmatpush1.bf16.msra.mxu0 %v835
        %839 = vmatprep.subr.bf16.mxu0 0
        %840 = vmatpush1.bf16.msra.mxu0 0
        %841 = vmatprep.subr.bf16.mxu0 0
        %842 = vmatpush1.bf16.msra.mxu0 0
        %843 = vmatprep.subr.bf16.mxu0 0
        %844 = vmatpush1.bf16.msra.mxu0 0
        %845 = vmatprep.subr.bf16.mxu0 0
        %846 = vmatpush1.bf16.msra.mxu0 0
        %847 = vmatprep.subr.bf16.mxu0 0
        %848 = vmatpush1.bf16.msra.mxu0 0
        %849 = vmatprep.subr.bf16.mxu0 0
        %850 = vmatpush1.bf16.msra.mxu0 0
        %851 = vmatprep.subr.bf16.mxu0 0
        %852 = vmatpush1.bf16.msra.mxu0 0
        %853 = vmatprep.subr.bf16.mxu0 0
        %854 = vmatpush1.bf16.msra.mxu0 0
        %855 = vmatprep.subr.bf16.mxu0 0
        %856 = vmatpush1.bf16.msra.mxu0 0
        %857 = vmatprep.subr.bf16.mxu0 0
        %858 = vmatpush1.bf16.msra.mxu0 0
        %859 = vmatprep.subr.bf16.mxu0 0
        %860 = vmatpush1.bf16.msra.mxu0 0
        %861 = vmatprep.subr.bf16.mxu0 0
        %862 = vmatpush1.bf16.msra.mxu0 0
        %863 = vmatprep.subr.bf16.mxu0 0
        %864 = vmatpush1.bf16.msra.mxu0 0
        %865 = vmatprep.subr.bf16.mxu0 0
        %866 = vmatpush1.bf16.msra.mxu0 0
        %867 = vmatprep.subr.bf16.mxu0 0
        %868 = vmatpush1.bf16.msra.mxu0 0
        %869 = vmatprep.mubr.bf16.mxu0 0
        %870 = vmatmul.mubr.bf16.gmra.mrb[0].mxu0 %v832
        %v871 = vpop.f32.mrb[0].mxu0
        %v872 = vadd.f32 0.0, %v871
        %v873 = vpop.f32.mrb[0].mxu0
        %v874 = vpop.f32.mrb[0].mxu0
        %v875 = vpop.f32.mrb[0].mxu0
        %876 = vdwg.mxu0
        %v877 = vpack.c.bf16 %v872, %v872
        %v879 = vunpack.c.l.b16 %v877
        %v880 = vpack.c.b16 %v879, %v879
        %881 = vrot.lane.b32.xlu0 %v880, 16
        %v882 = vpop.permute.xlu0 %881
        %vm884 = vcmask 191616
        %885 = vst.msk [vmem:[#allocation4] sm:$0xf] %vm884, %v882
        %v886 = vld [vmem:[#allocation2] sm:$0xf]
        %v887 = vld [vmem:[#allocation3] sm:$0xf]
        %v889 = vunpack.c.l.b16 %v886
        %v890 = vpack.c.b16 %v889, %v889
        %891 = vrot.lane.b32.xlu0 %v890, 104
        %v892 = vpop.permute.xlu0 %891
        %v894 = vunpack.c.l.b16 %v887
        %v895 = vpack.c.b16 %v894, %v894
        %896 = vrot.lane.b32.xlu0 %v895, 104
        %v897 = vpop.permute.xlu0 %896
        %v899 = vsel %vm515, %v892, 0
        %v902 = vsel %vm515, %v897, 0
        %904 = vmatprep.subr.bf16.mxu0 0
        %905 = vmatpush1.bf16.xpose.msra.mxu0 %v902
        %906 = vmatprep.subr.bf16.mxu0 0
        %907 = vmatpush1.bf16.xpose.msra.mxu0 0
        %908 = vmatprep.subr.bf16.mxu0 0
        %909 = vmatpush1.bf16.xpose.msra.mxu0 0
        %910 = vmatprep.subr.bf16.mxu0 0
        %911 = vmatpush1.bf16.xpose.msra.mxu0 0
        %912 = vmatprep.subr.bf16.mxu0 0
        %913 = vmatpush1.bf16.xpose.msra.mxu0 0
        %914 = vmatprep.subr.bf16.mxu0 0
        %915 = vmatpush1.bf16.xpose.msra.mxu0 0
        %916 = vmatprep.subr.bf16.mxu0 0
        %917 = vmatpush1.bf16.xpose.msra.mxu0 0
        %918 = vmatprep.subr.bf16.mxu0 0
        %919 = vmatpush1.bf16.xpose.msra.mxu0 0
        %920 = vmatprep.subr.bf16.mxu0 0
        %921 = vmatpush1.bf16.xpose.msra.mxu0 0
        %922 = vmatprep.subr.bf16.mxu0 0
        %923 = vmatpush1.bf16.xpose.msra.mxu0 0
        %924 = vmatprep.subr.bf16.mxu0 0
        %925 = vmatpush1.bf16.xpose.msra.mxu0 0
        %926 = vmatprep.subr.bf16.mxu0 0
        %927 = vmatpush1.bf16.xpose.msra.mxu0 0
        %928 = vmatprep.subr.bf16.mxu0 0
        %929 = vmatpush1.bf16.xpose.msra.mxu0 0
        %930 = vmatprep.subr.bf16.mxu0 0
        %931 = vmatpush1.bf16.xpose.msra.mxu0 0
        %932 = vmatprep.subr.bf16.mxu0 0
        %933 = vmatpush1.bf16.xpose.msra.mxu0 0
        %934 = vmatprep.subr.bf16.mxu0 0
        %935 = vmatpush1.bf16.xpose.msra.mxu0 0
        %936 = vmatprep.mubr.bf16.mxu0 0
        %937 = vmatmul.mubr.bf16.gmra.mrb[0].mxu0 %v899
        %v938 = vpop.f32.mrb[0].mxu0
        %v939 = vadd.f32 0.0, %v938
        %v940 = vpop.f32.mrb[0].mxu0
        %v941 = vpop.f32.mrb[0].mxu0
        %v942 = vpop.f32.mrb[0].mxu0
        %943 = vdwg.mxu0
        %v944 = vsel %vm512, %v939, -1e+30
        %v945 = vsel %vm515, %v944, -inf
        %946 = vmax.xlane.f32.xlu0 %v945
        %v947 = vpop.xlane.xlu0 %946
        %v948 = vsub.f32 %v944, %v947
        %v949 = vmul.f32 %v948, 1.442695
        %v950 = vpow.pop %v949
        %v951 = vsel %vm515, %v950, 0.0
        %952 = vadd.xlane.f32.xlu0 %v951
        %v953 = vpop.xlane.xlu0 %952
        %v954 = vrcp.pop %v953
        %v955 = vmul.f32 %v950, %v954
        %v956 = vpack.c.bf16 %v955, %v955
        %957 = vrot.lane.b32.xlu0 %v895, 72
        %v958 = vpop.permute.xlu0 %957
        %v960 = vsel %vm515, %v956, 0
        %v963 = vsel %vm583, %v958, 0
        %965 = vmatprep.subr.bf16.mxu0 0
        %966 = vmatpush1.bf16.msra.mxu0 %v963
        %967 = vmatprep.subr.bf16.mxu0 0
        %968 = vmatpush1.bf16.msra.mxu0 0
        %969 = vmatprep.subr.bf16.mxu0 0
        %970 = vmatpush1.bf16.msra.mxu0 0
        %971 = vmatprep.subr.bf16.mxu0 0
        %972 = vmatpush1.bf16.msra.mxu0 0
        %973 = vmatprep.subr.bf16.mxu0 0
        %974 = vmatpush1.bf16.msra.mxu0 0
        %975 = vmatprep.subr.bf16.mxu0 0
        %976 = vmatpush1.bf16.msra.mxu0 0
        %977 = vmatprep.subr.bf16.mxu0 0
        %978 = vmatpush1.bf16.msra.mxu0 0
        %979 = vmatprep.subr.bf16.mxu0 0
        %980 = vmatpush1.bf16.msra.mxu0 0
        %981 = vmatprep.subr.bf16.mxu0 0
        %982 = vmatpush1.bf16.msra.mxu0 0
        %983 = vmatprep.subr.bf16.mxu0 0
        %984 = vmatpush1.bf16.msra.mxu0 0
        %985 = vmatprep.subr.bf16.mxu0 0
        %986 = vmatpush1.bf16.msra.mxu0 0
        %987 = vmatprep.subr.bf16.mxu0 0
        %988 = vmatpush1.bf16.msra.mxu0 0
        %989 = vmatprep.subr.bf16.mxu0 0
        %990 = vmatpush1.bf16.msra.mxu0 0
        %991 = vmatprep.subr.bf16.mxu0 0
        %992 = vmatpush1.bf16.msra.mxu0 0
        %993 = vmatprep.subr.bf16.mxu0 0
        %994 = vmatpush1.bf16.msra.mxu0 0
        %995 = vmatprep.subr.bf16.mxu0 0
        %996 = vmatpush1.bf16.msra.mxu0 0
        %997 = vmatprep.mubr.bf16.mxu0 0
        %998 = vmatmul.mubr.bf16.gmra.mrb[0].mxu0 %v960
        %v999 = vpop.f32.mrb[0].mxu0
        %v1000 = vadd.f32 0.0, %v999
        %v1001 = vpop.f32.mrb[0].mxu0
        %v1002 = vpop.f32.mrb[0].mxu0
        %v1003 = vpop.f32.mrb[0].mxu0
        %1004 = vdwg.mxu0
        %v1005 = vpack.c.bf16 %v1000, %v1000
        %v1007 = vunpack.c.l.b16 %v1005
        %v1008 = vpack.c.b16 %v1007, %v1007
        %1009 = vrot.lane.b32.xlu0 %v1008, 24
        %v1010 = vpop.permute.xlu0 %1009
        %vm1012 = vcmask 257216
        %1013 = vst.msk [vmem:[#allocation4] sm:$0xf] %vm1012, %v1010
        %v1014 = vld [vmem:[#allocation4] sm:$0xf]
        %v1015 = vld [vmem:[#allocation13] sm:$0xf]
        %v1016 = vld [vmem:[#allocation13 + $0x4] sm:$0xf]
        %v1017 = vld [vmem:[#allocation13 + $0x8] sm:$0xf]
        %v1018 = vld [vmem:[#allocation13 + $0xc] sm:$0xf]
        %v1019 = vld [vmem:[#allocation14] sm:$0x1]
        %v1021 = vlaneseq
        %v1022 = vshrl.u32 %v1021, 7
        %v1023 = vsub.s32 0, %v1022
        %v1024 = vrot.slane %v1019, %v1023
        %v1030 = vunpack.c.l.b16 %v1015
        %v1031 = vunpack.c.l.b16 %v1016
        %v1032 = vunpack.c.l.b16 %v1017
        %v1033 = vunpack.c.l.b16 %v1018
        %v1034 = vpack.c.b16 %v1031, %v1030
        %v1035 = vpack.c.b16 %v1033, %v1032
        %v1039 = vsel %vm395, %v1014, 0
        %1041 = vmatprep.subr.bf16.mxu0 0
        %1042 = vmatpush1.bf16.msra.mxu0 %v1034
        %1043 = vmatprep.subr.bf16.mxu0 0
        %1044 = vmatpush1.bf16.msra.mxu0 %v1035
        %1045 = vmatprep.subr.bf16.mxu0 0
        %1046 = vmatpush1.bf16.msra.mxu0 0
        %1047 = vmatprep.subr.bf16.mxu0 0
        %1048 = vmatpush1.bf16.msra.mxu0 0
        %1049 = vmatprep.subr.bf16.mxu0 0
        %1050 = vmatpush1.bf16.msra.mxu0 0
        %1051 = vmatprep.subr.bf16.mxu0 0
        %1052 = vmatpush1.bf16.msra.mxu0 0
        %1053 = vmatprep.subr.bf16.mxu0 0
        %1054 = vmatpush1.bf16.msra.mxu0 0
        %1055 = vmatprep.subr.bf16.mxu0 0
        %1056 = vmatpush1.bf16.msra.mxu0 0
        %1057 = vmatprep.subr.bf16.mxu0 0
        %1058 = vmatpush1.bf16.msra.mxu0 0
        %1059 = vmatprep.subr.bf16.mxu0 0
        %1060 = vmatpush1.bf16.msra.mxu0 0
        %1061 = vmatprep.subr.bf16.mxu0 0
        %1062 = vmatpush1.bf16.msra.mxu0 0
        %1063 = vmatprep.subr.bf16.mxu0 0
        %1064 = vmatpush1.bf16.msra.mxu0 0
        %1065 = vmatprep.subr.bf16.mxu0 0
        %1066 = vmatpush1.bf16.msra.mxu0 0
        %1067 = vmatprep.subr.bf16.mxu0 0
        %1068 = vmatpush1.bf16.msra.mxu0 0
        %1069 = vmatprep.subr.bf16.mxu0 0
        %1070 = vmatpush1.bf16.msra.mxu0 0
        %1071 = vmatprep.subr.bf16.mxu0 0
        %1072 = vmatpush1.bf16.msra.mxu0 0
        %1073 = vmatprep.mubr.bf16.mxu0 0
        %1074 = vmatmul.mubr.bf16.gmra.mrb[0].mxu0 %v1039
        %v1075 = vpop.f32.mrb[0].mxu0
        %v1076 = vadd.f32 %v1024, %v1075
        %v1077 = vpop.f32.mrb[0].mxu0
        %v1078 = vpop.f32.mrb[0].mxu0
        %v1079 = vpop.f32.mrb[0].mxu0
        %1080 = vdwg.mxu0
        %1081 = vst [vmem:[%s376] sm:$0xff] %v1076
        %s1082 = sand.u32 %s188, 1
        %s1083 = scalar_lea.sflag [#allocation7], %s1082
        %s1084 = sand.u32 %s188, 1
        %s1085 = smul.addr %s1084, 8
        %s1086 = scalar_lea.vmem [#allocation16], %s1085
        // Predicated region
        $region69: #{tpu_custom_call.1} parent=43 // pred_check
          %p1087 = pneg %p198
        $region70: #{tpu_custom_call.1} parent=43 // pred_check_branch
          %1089 = sbr.rel (%p1087) target = $region72
        $region71: #{tpu_custom_call.1} parent=43 // pred_region
          %s1091 = ssub.s32 128, 128
          %1092 = vsyncadd %s1083, %s1091
          %s1093 = sadd.s32 %s33, %s32
          %s1094 = smul.addr %s1093, 128
          %s1095 = scalar_lea.hbm %s6, %s1094
          %s1097 = sshll.u32 %s1086, 4
          %s1098 = int_to_ptr.vmem [resolvable:$true] %s1097
          %1100 = dma.vmem_to_hbm [thread:$0]  %s1098, 128, %s1095, %s1083
        $region72: #{tpu_custom_call.1} parent=43 // pred_fallthru
          _
      $region44: #{tpu_custom_call.1} parent=5 // pred_fallthru
        _
      %p1101 = scmp.le.s32.totalorder 2, %s23
      // Predicated region
      $region73: #{tpu_custom_call.1} parent=5 // pred_check
        %p1102 = pneg %p1101
      $region74: #{tpu_custom_call.1} parent=5 // pred_check_branch
        %1104 = sbr.rel (%p1102) target = $region76
      $region75: #{tpu_custom_call.1} parent=5 // pred_region
        %s1105 = ssub.s32 %s23, 2
        // Predicated region
        $region77: #{tpu_custom_call.1} parent=75 // pred_check
          %p1106 = pneg %p204
        $region78: #{tpu_custom_call.1} parent=75 // pred_check_branch
          %1108 = sbr.rel (%p1106) target = $region80
        $region79: #{tpu_custom_call.1} parent=75 // pred_region
          %s1109 = sand.u32 %s189, 1
          %s1110 = scalar_lea.sflag [#allocation7], %s1109
          %s1111 = sand.u32 %s189, 1
          %s1112 = smul.addr %s1111, 8
          %s1113 = scalar_lea.vmem [#allocation16], %s1112
          %1114 = dma.done %s1110, 128
        $region80: #{tpu_custom_call.1} parent=75 // pred_fallthru
          _
      $region76: #{tpu_custom_call.1} parent=5 // pred_fallthru
        _
    $region6: #{tpu_custom_call.1} parent=1 // loop_footer
      %s27 = sadd.s32 1, %s23
    $region7: #{tpu_custom_call.1} parent=1 // loop_footer_branch
      %22 = sbr.rel target = $region3
    $region8: #{tpu_custom_call.1} parent=1 // loop_exit
      _
    %1115 = vsyncpa [#allocation6], 1
    %s1116 = scalar_lea.sflag [#allocation6], 1
    %1117 = vsyncpa %s1116, 1
    %1118 = vsyncpa [#allocation9], 1
    %s1119 = scalar_lea.sflag [#allocation9], 1
    %1120 = vsyncpa %s1119, 1
    %1121 = vsyncpa [#allocation12], 1
    %1122 = vsyncpa [#allocation15], 1
    %1123 = vsyncpa [#allocation7], 1
    %s1124 = scalar_lea.sflag [#allocation7], 1
    %1125 = vsyncpa %s1124, 1

</llo_original>
